<compile_context>
chip_gen: v7x
topology: tpu7x:2x2x1
jax: 0.10.0
libtpu: 0.0.40
codegen_flags: <defaults>
</compile_context>

<pallas_src>
import jax
import jax.numpy as jnp
from jax.experimental import pallas as pl
from jax.experimental.pallas import tpu as pltpu


def _round_up(x, m):
    return ((x + m - 1) // m) * m


# ----------------------------------------------------------------------------
# Kernel: whole hot path (4 matmuls + bias/ReLU/residual) fused in one body.
# ----------------------------------------------------------------------------
def _mlp_kernel(x_ref, w0_ref, b0_ref, w1_ref, b1_ref, w2_ref, b2_ref,
                w3_ref, o_ref):
    f32 = jnp.float32
    bf16 = jnp.bfloat16
    n_classes = o_ref.shape[1]

    # Cast the f32 input tile to bf16 in-kernel (VPU slots are idle under MXU).
    x = x_ref[...].astype(bf16)

    # lin -> relu -> (drop = identity); carry activation in bf16.
    h0 = jnp.maximum(
        jnp.dot(x, w0_ref[...], preferred_element_type=f32) + b0_ref[...],
        0.0).astype(bf16)

    # lin1 -> relu1 -> (drop1) -> residual add (add in f32, re-cast once).
    h1 = (jnp.maximum(
        jnp.dot(h0, w1_ref[...], preferred_element_type=f32) + b1_ref[...],
        0.0) + h0.astype(f32)).astype(bf16)

    # lin2 -> relu2 -> (drop2) -> residual add.
    h2 = (jnp.maximum(
        jnp.dot(h1, w2_ref[...], preferred_element_type=f32) + b2_ref[...],
        0.0) + h1.astype(f32)).astype(bf16)

    # li (no bias). w3 is lane-padded to 128 for the MXU; store only the
    # real n_classes columns (masked in-VMEM store, contiguous HBM tile).
    out = jnp.dot(h2, w3_ref[...], preferred_element_type=f32)
    o_ref[...] = out[:, :n_classes].astype(o_ref.dtype)


# ----------------------------------------------------------------------------
# One-time parameter preparation (hoisted out of the hot path).
# ----------------------------------------------------------------------------
def prepare_params(params, matmul_dtype=jnp.bfloat16):
    """Cast weights to bf16, pad the head to 128 lanes, reshape biases."""
    w0, b0, w1, b1, w2, b2, w3 = params
    H = w0.shape[1]
    n_classes = w3.shape[1]
    nc_pad = max(128, _round_up(n_classes, 128))
    w3p = jnp.zeros((H, nc_pad), matmul_dtype).at[:, :n_classes].set(
        w3.astype(matmul_dtype))
    return {
        "w0": w0.astype(matmul_dtype),
        "b0": b0.reshape(1, H).astype(jnp.float32),
        "w1": w1.astype(matmul_dtype),
        "b1": b1.reshape(1, H).astype(jnp.float32),
        "w2": w2.astype(matmul_dtype),
        "b2": b2.reshape(1, H).astype(jnp.float32),
        "w3": w3p,
        "n_classes": n_classes,
    }


def _choose_block_b(B, block_b):
    """Multiple of 8, clamped to the batch, and >=2 grid steps when possible
    (v7x has 2 TensorCores; a single-step grid leaves one idle)."""
    bb = max(8, _round_up(min(block_b, _round_up(B, 8)), 8))
    if -(-B // bb) < 2 and B > 8:          # would be a 1-step grid
        bb = max(8, _round_up(-(-B // 2), 8))
    return bb


# ----------------------------------------------------------------------------
# Wrapper
# ----------------------------------------------------------------------------
def mix_classification_big_expv(x, prepared, *, block_b=256):
    """x: (B, 2*input_size) float32. Returns (B, n_classes) float32."""
    B, d_in = x.shape
    H = prepared["w0"].shape[1]
    nc_pad = prepared["w3"].shape[1]
    n_classes = prepared["n_classes"]

    bb = _choose_block_b(B, block_b)
    grid = (pl.cdiv(B, bb),)

    full = lambda shape: pl.BlockSpec(shape, lambda i: (0,) * len(shape))

    w_bytes = (d_in * H + 2 * H * H + H * nc_pad) * 2 + 3 * H * 4
    cost = pl.CostEstimate(
        flops=2 * B * (d_in * H + 2 * H * H + H * nc_pad),
        transcendentals=0,
        bytes_accessed=B * d_in * 4 + B * n_classes * 4 + w_bytes,
    )

    return pl.pallas_call(
        _mlp_kernel,
        out_shape=jax.ShapeDtypeStruct((B, n_classes), jnp.float32),
        grid_spec=pltpu.PrefetchScalarGridSpec(
            num_scalar_prefetch=0,
            grid=grid,
            in_specs=[
                pl.BlockSpec((bb, d_in), lambda i: (i, 0)),   # x tile (f32)
                full((d_in, H)),        # w0 (bf16)
                full((1, H)),           # b0 (f32)
                full((H, H)),           # w1
                full((1, H)),           # b1
                full((H, H)),           # w2
                full((1, H)),           # b2
                full((H, nc_pad)),      # w3 (bf16, zero-padded to 128 lanes)
            ],
            out_specs=pl.BlockSpec((bb, n_classes), lambda i: (i, 0)),
        ),
        compiler_params=pltpu.CompilerParams(
            dimension_semantics=("parallel",)),
        cost_estimate=cost,
    )(x, prepared["w0"], prepared["b0"], prepared["w1"], prepared["b1"],
      prepared["w2"], prepared["b2"], prepared["w3"])


# ----------------------------------------------------------------------------
# Init + references
# ----------------------------------------------------------------------------
def init_params(key, input_size, n_classes):
    """PyTorch nn.Linear-style init (uniform +/- 1/sqrt(fan_in)).
    Weights stored as (in_features, out_features)."""
    d_in = 2 * input_size
    H = 256

    def linear(key, fan_in, fan_out, bias=True):
        kw, kb = jax.random.split(key)
        bound = 1.0 / jnp.sqrt(fan_in)
        w = jax.random.uniform(kw, (fan_in, fan_out), jnp.float32, -bound, bound)
        if bias:
            b = jax.random.uniform(kb, (fan_out,), jnp.float32, -bound, bound)
            return w, b
        return (w,)

    k0, k1, k2, k3 = jax.random.split(key, 4)
    w0, b0 = linear(k0, d_in, H)
    w1, b1 = linear(k1, H, H)
    w2, b2 = linear(k2, H, H)
    (w3,) = linear(k3, H, n_classes, bias=False)
    return (w0, b0, w1, b1, w2, b2, w3)


def _reference_bf16(x, params):
    """Reference matching the kernel's numerics: bf16 matmul operands and
    bf16 activation carries, f32 accumulation and elementwise math."""
    w0, b0, w1, b1, w2, b2, w3 = params
    bf, f32 = jnp.bfloat16, jnp.float32

    def dot(a, b):
        return jnp.dot(a.astype(bf), b.astype(bf), preferred_element_type=f32)

    h0 = jnp.maximum(dot(x, w0) + b0, 0.0).astype(bf)
    h1 = (jnp.maximum(dot(h0, w1) + b1, 0.0) + h0.astype(f32)).astype(bf)
    h2 = (jnp.maximum(dot(h1, w2) + b2, 0.0) + h1.astype(f32)).astype(bf)
    return dot(h2, w3)


def _reference_f32(x, params):
    w0, b0, w1, b1, w2, b2, w3 = params
    h0 = jnp.maximum(x @ w0 + b0, 0.0)
    h1 = jnp.maximum(h0 @ w1 + b1, 0.0) + h0
    h2 = jnp.maximum(h1 @ w2 + b2, 0.0) + h1
    return h2 @ w3


if __name__ == "__main__":
    input_size = 16      # module input is 2 * input_size = 32 features
    n_classes = 10
    batch = 512          # two grid steps at block_b=256 (exercises tiling)

    key = jax.random.PRNGKey(0)
    kx, kp = jax.random.split(key)
    x = jax.random.normal(kx, (batch, 2 * input_size), jnp.float32)
    params = init_params(kp, input_size, n_classes)
    prepared = prepare_params(params)          # hoisted one-time weight prep

    out = mix_classification_big_expv(x, prepared, block_b=256)
    out = jax.block_until_ready(out)

    assert out.shape == (batch, n_classes)

    # Tight check vs a reference with identical numerics (bf16 matmuls and
    # bf16 activation carries, f32 accumulation).
    ref_bf16 = _reference_bf16(x, params)
    assert jnp.allclose(out, ref_bf16, atol=2e-2, rtol=2e-2), \
        "mismatch vs bf16 reference"

    # Loose sanity check vs the pure-f32 reference (bf16 rounding tolerance).
    ref_f32 = _reference_f32(x, params)
    assert jnp.allclose(out, ref_f32, atol=1.5e-1, rtol=1e-1), \
        "mismatch vs f32 reference"

    print("KERNEL_OK")
</pallas_src>

<mosaic_0001>
module attributes {stable_mosaic.version = 11 : i64} {
  func.func @_mlp_kernel(%arg0: i32, %arg1: memref<256x32xf32, #tpu.memory_space<vmem>>, %arg2: memref<32x256xbf16, #tpu.memory_space<vmem>>, %arg3: memref<1x256xf32, #tpu.memory_space<vmem>>, %arg4: memref<256x256xbf16, #tpu.memory_space<vmem>>, %arg5: memref<1x256xf32, #tpu.memory_space<vmem>>, %arg6: memref<256x256xbf16, #tpu.memory_space<vmem>>, %arg7: memref<1x256xf32, #tpu.memory_space<vmem>>, %arg8: memref<256x128xbf16, #tpu.memory_space<vmem>>, %arg9: memref<256x10xf32, #tpu.memory_space<vmem>>) attributes {dimension_semantics = [#tpu.dimension_semantics<parallel>], iteration_bounds = array<i64: 2>, scalar_prefetch = 0 : i64, scratch_operands = 0 : i64, tpu.core_type = #tpu.core_type<tc>, window_params = [{transform_indices = @transform_0, window_bounds = array<i64: 256, 32>}, {pipeline_mode = #tpu.pipeline_mode<synchronous>, transform_indices = @transform_1, window_bounds = array<i64: 32, 256>}, {pipeline_mode = #tpu.pipeline_mode<synchronous>, transform_indices = @transform_2, window_bounds = array<i64: 1, 256>}, {pipeline_mode = #tpu.pipeline_mode<synchronous>, transform_indices = @transform_3, window_bounds = array<i64: 256, 256>}, {pipeline_mode = #tpu.pipeline_mode<synchronous>, transform_indices = @transform_4, window_bounds = array<i64: 1, 256>}, {pipeline_mode = #tpu.pipeline_mode<synchronous>, transform_indices = @transform_5, window_bounds = array<i64: 256, 256>}, {pipeline_mode = #tpu.pipeline_mode<synchronous>, transform_indices = @transform_6, window_bounds = array<i64: 1, 256>}, {pipeline_mode = #tpu.pipeline_mode<synchronous>, transform_indices = @transform_7, window_bounds = array<i64: 256, 128>}, {transform_indices = @transform_8, window_bounds = array<i64: 256, 10>}]} {
    %c0 = arith.constant 0 : index
    %c0_0 = arith.constant 0 : index
    %0 = vector.load %arg1[%c0, %c0_0] : memref<256x32xf32, #tpu.memory_space<vmem>>, vector<256x32xf32>
    %1 = arith.truncf %0 : vector<256x32xf32> to vector<256x32xbf16>
    %c0_1 = arith.constant 0 : index
    %c0_2 = arith.constant 0 : index
    %2 = vector.load %arg2[%c0_1, %c0_2] : memref<32x256xbf16, #tpu.memory_space<vmem>>, vector<32x256xbf16>
    %cst = arith.constant dense<0.000000e+00> : vector<256x256xf32>
    %3 = tpu.matmul %1, %2, %cst {dimension_numbers = #tpu.dot_dimension_numbers<[1], [0], [0], [1], [0, 0, 1, 1], [], []>} : vector<256x32xbf16>, vector<32x256xbf16>, vector<256x256xf32> -> vector<256x256xf32>
    %c0_3 = arith.constant 0 : index
    %c0_4 = arith.constant 0 : index
    %4 = vector.load %arg3[%c0_3, %c0_4] : memref<1x256xf32, #tpu.memory_space<vmem>>, vector<1x256xf32>
    %5 = vector.broadcast %4 : vector<1x256xf32> to vector<256x256xf32>
    %6 = arith.addf %3, %5 : vector<256x256xf32>
    %cst_5 = arith.constant 0.000000e+00 : f32
    %7 = vector.broadcast %cst_5 : f32 to vector<256x256xf32>
    %8 = arith.maximumf %6, %7 : vector<256x256xf32>
    %9 = arith.truncf %8 : vector<256x256xf32> to vector<256x256xbf16>
    %c0_6 = arith.constant 0 : index
    %c0_7 = arith.constant 0 : index
    %10 = vector.load %arg4[%c0_6, %c0_7] : memref<256x256xbf16, #tpu.memory_space<vmem>>, vector<256x256xbf16>
    %cst_8 = arith.constant dense<0.000000e+00> : vector<256x256xf32>
    %11 = tpu.matmul %9, %10, %cst_8 {dimension_numbers = #tpu.dot_dimension_numbers<[1], [0], [0], [1], [0, 0, 1, 1], [], []>} : vector<256x256xbf16>, vector<256x256xbf16>, vector<256x256xf32> -> vector<256x256xf32>
    %c0_9 = arith.constant 0 : index
    %c0_10 = arith.constant 0 : index
    %12 = vector.load %arg5[%c0_9, %c0_10] : memref<1x256xf32, #tpu.memory_space<vmem>>, vector<1x256xf32>
    %13 = vector.broadcast %12 : vector<1x256xf32> to vector<256x256xf32>
    %14 = arith.addf %11, %13 : vector<256x256xf32>
    %cst_11 = arith.constant 0.000000e+00 : f32
    %15 = vector.broadcast %cst_11 : f32 to vector<256x256xf32>
    %16 = arith.maximumf %14, %15 : vector<256x256xf32>
    %17 = arith.extf %9 : vector<256x256xbf16> to vector<256x256xf32>
    %18 = arith.addf %16, %17 : vector<256x256xf32>
    %19 = arith.truncf %18 : vector<256x256xf32> to vector<256x256xbf16>
    %c0_12 = arith.constant 0 : index
    %c0_13 = arith.constant 0 : index
    %20 = vector.load %arg6[%c0_12, %c0_13] : memref<256x256xbf16, #tpu.memory_space<vmem>>, vector<256x256xbf16>
    %cst_14 = arith.constant dense<0.000000e+00> : vector<256x256xf32>
    %21 = tpu.matmul %19, %20, %cst_14 {dimension_numbers = #tpu.dot_dimension_numbers<[1], [0], [0], [1], [0, 0, 1, 1], [], []>} : vector<256x256xbf16>, vector<256x256xbf16>, vector<256x256xf32> -> vector<256x256xf32>
    %c0_15 = arith.constant 0 : index
    %c0_16 = arith.constant 0 : index
    %22 = vector.load %arg7[%c0_15, %c0_16] : memref<1x256xf32, #tpu.memory_space<vmem>>, vector<1x256xf32>
    %23 = vector.broadcast %22 : vector<1x256xf32> to vector<256x256xf32>
    %24 = arith.addf %21, %23 : vector<256x256xf32>
    %cst_17 = arith.constant 0.000000e+00 : f32
    %25 = vector.broadcast %cst_17 : f32 to vector<256x256xf32>
    %26 = arith.maximumf %24, %25 : vector<256x256xf32>
    %27 = arith.extf %19 : vector<256x256xbf16> to vector<256x256xf32>
    %28 = arith.addf %26, %27 : vector<256x256xf32>
    %29 = arith.truncf %28 : vector<256x256xf32> to vector<256x256xbf16>
    %c0_18 = arith.constant 0 : index
    %c0_19 = arith.constant 0 : index
    %30 = vector.load %arg8[%c0_18, %c0_19] : memref<256x128xbf16, #tpu.memory_space<vmem>>, vector<256x128xbf16>
    %cst_20 = arith.constant dense<0.000000e+00> : vector<256x128xf32>
    %31 = tpu.matmul %29, %30, %cst_20 {dimension_numbers = #tpu.dot_dimension_numbers<[1], [0], [0], [1], [0, 0, 1, 1], [], []>} : vector<256x256xbf16>, vector<256x128xbf16>, vector<256x128xf32> -> vector<256x128xf32>
    %32 = vector.extract_strided_slice %31 {offsets = [0, 0], sizes = [256, 10], strides = [1, 1]} : vector<256x128xf32> to vector<256x10xf32>
    %c0_21 = arith.constant 0 : index
    %c0_22 = arith.constant 0 : index
    %33 = vector.load %arg9[%c0_21, %c0_22] : memref<256x10xf32, #tpu.memory_space<vmem>>, vector<256x10xf32>
    tpu.vector_store %arg9[%c0_21, %c0_22], %32 {strides = array<i32>} : memref<256x10xf32, #tpu.memory_space<vmem>>, vector<256x10xf32>,
    return
  }
  func.func @transform_0(%arg0: i32) -> (i32, i32) {
    %c0_i32 = arith.constant 0 : i32
    %c0_i32_0 = arith.constant 0 : i32
    return %arg0, %c0_i32 : i32, i32
  }
  func.func @transform_1(%arg0: i32) -> (i32, i32) {
    %c0_i32 = arith.constant 0 : i32
    %c0_i32_0 = arith.constant 0 : i32
    %c0_i32_1 = arith.constant 0 : i32
    return %c0_i32, %c0_i32_0 : i32, i32
  }
  func.func @transform_2(%arg0: i32) -> (i32, i32) {
    %c0_i32 = arith.constant 0 : i32
    %c0_i32_0 = arith.constant 0 : i32
    %c0_i32_1 = arith.constant 0 : i32
    return %c0_i32, %c0_i32_0 : i32, i32
  }
  func.func @transform_3(%arg0: i32) -> (i32, i32) {
    %c0_i32 = arith.constant 0 : i32
    %c0_i32_0 = arith.constant 0 : i32
    %c0_i32_1 = arith.constant 0 : i32
    return %c0_i32, %c0_i32_0 : i32, i32
  }
  func.func @transform_4(%arg0: i32) -> (i32, i32) {
    %c0_i32 = arith.constant 0 : i32
    %c0_i32_0 = arith.constant 0 : i32
    %c0_i32_1 = arith.constant 0 : i32
    return %c0_i32, %c0_i32_0 : i32, i32
  }
  func.func @transform_5(%arg0: i32) -> (i32, i32) {
    %c0_i32 = arith.constant 0 : i32
    %c0_i32_0 = arith.constant 0 : i32
    %c0_i32_1 = arith.constant 0 : i32
    return %c0_i32, %c0_i32_0 : i32, i32
  }
  func.func @transform_6(%arg0: i32) -> (i32, i32) {
    %c0_i32 = arith.constant 0 : i32
    %c0_i32_0 = arith.constant 0 : i32
    %c0_i32_1 = arith.constant 0 : i32
    return %c0_i32, %c0_i32_0 : i32, i32
  }
  func.func @transform_7(%arg0: i32) -> (i32, i32) {
    %c0_i32 = arith.constant 0 : i32
    %c0_i32_0 = arith.constant 0 : i32
    %c0_i32_1 = arith.constant 0 : i32
    return %c0_i32, %c0_i32_0 : i32, i32
  }
  func.func @transform_8(%arg0: i32) -> (i32, i32) {
    %c0_i32 = arith.constant 0 : i32
    %c0_i32_0 = arith.constant 0 : i32
    return %arg0, %c0_i32 : i32, i32
  }
}

</mosaic_0001>

<llo_original>
// kernel: tpu_custom_call.1
$region0: #{tpu_custom_call.1}
  #allocation0 [shape = 'u32[]', space=smem, size = 0x4, offset = 0x4, fixed_abs, tag = 'smem constant byte address 0x4 - core index']
  #allocation1 [shape = 'u32[144,128]{1,0:T(1,128)}', space=vmem, size = 0x12000, scoped, tag = 'internal scratch']
  %s0 = inlined_call_operand.vmem [shape: f32[512,32], index: 0, kind: input, shape index: {}]
  %s1 = inlined_call_operand.hbm [shape: bf16[32,256], index: 1, kind: input, shape index: {}]
  %s2 = inlined_call_operand.vmem [shape: f32[1,256], index: 2, kind: input, shape index: {}]
  %s3 = inlined_call_operand.vmem [shape: bf16[256,256], index: 3, kind: input, shape index: {}]
  %s4 = inlined_call_operand.vmem [shape: f32[1,256], index: 4, kind: input, shape index: {}]
  %s5 = inlined_call_operand.vmem [shape: bf16[256,256], index: 5, kind: input, shape index: {}]
  %s6 = inlined_call_operand.vmem [shape: f32[1,256], index: 6, kind: input, shape index: {}]
  %s7 = inlined_call_operand.vmem [shape: bf16[256,128], index: 7, kind: input, shape index: {}]
  %s8 = inlined_call_operand.vmem [shape: f32[512,10], index: 8, kind: output, shape index: {}]
  %s9 = sld [smem:[#allocation0]]
  $region69: #{tpu_custom_call.1} parent=0
    _
  %s11 = ssub.s32 1, %s9
  %s12 = scalar_select 0, %s11, %s9
  $region1: #{tpu_custom_call.1} parent=0
    #allocation2 [shape = 'u8[16384]{0}', space=vmem, size = 0x4000, scoped, tag = 'input window, operand 1, single buffered']
    #allocation3 [shape = 's32[2]{0}', space=sflag, size = 0x8, scoped, tag = 'scoped memory for tpu_custom_call.1']
    %13 = vsyncpa [#allocation3], 0
    loop: start=0, step=1, limit=4
    $region2: #{tpu_custom_call.1} parent=1 // loop_pre_header
      _
    $region3: #{tpu_custom_call.1} parent=1 // loop_header
      %s15 = sphi 0, %s19
      %p16 = scmp.ge.s32.totalorder %s15, 4
      %s25 = sphi 0, %s27
      %s28 = sphi 0, %s25
      %s29 = sphi 0, %s28
      %s45 = sphi 0, %s29
      %s49 = sphi 0, %s49
      %s51 = sphi 0, %s49
      %s52 = sphi 0, %s51
      %s66 = sphi 0, %s52
      %s70 = sphi 0, %s70
      %s72 = sphi 0, %s70
      %s73 = sphi 0, %s72
      %s87 = sphi 0, %s73
      %s91 = sphi 0, %s91
      %s93 = sphi 0, %s91
      %s94 = sphi 0, %s93
      %s108 = sphi 0, %s94
      %s112 = sphi 0, %s112
      %s114 = sphi 0, %s112
      %s115 = sphi 0, %s114
      %s129 = sphi 0, %s115
      %s133 = sphi 0, %s133
      %s135 = sphi 0, %s133
      %s136 = sphi 0, %s135
      %s150 = sphi 0, %s136
      %s154 = sphi 0, %s154
      %s156 = sphi 0, %s154
      %s157 = sphi 0, %s156
      %s171 = sphi 0, %s157
      %s175 = sphi 0, %s175
      %s177 = sphi 0, %s175
      %s178 = sphi 0, %s177
      %s192 = sphi 0, %s178
      %s198 = sphi 0, %s200
      %s201 = sphi 0, %s198
      %s202 = sphi 0, %s201
      %s218 = sphi 0, %s202
    $region4: #{tpu_custom_call.1} parent=1 // loop_header_branch
      %18 = sbr.rel (%p16) target = $region8
    $region5: #{tpu_custom_call.1} parent=1 // loop_body
      %s20 = ssub.s32 %s15, 1
      %s21 = ssub.s32 %s15, 2
      %s22 = sadd.s32 %s15, 1
      %s23 = ssub.s32 %s15, %s22
      %p24 = scmp.eq.s32.totalorder %s23, 0
      %s26 = sadd.s32 %s25, 1
      %s27 = scalar_select %p24, %s25, %s26
      %p30 = pneg %p24
      %p31 = scmp.eq.s32.totalorder %s15, 1
      %p32 = por %p30, %p31
      %p33 = scmp.ne.s32.totalorder %s25, %s28
      %p34 = scmp.eq.s32.totalorder %s15, 0
      %p35 = por %p33, %p34
      %p36 = scmp.ne.s32.totalorder %s25, %s28
      %p37 = scmp.eq.s32.totalorder %s20, 1
      %p38 = por %p36, %p37
      %p39 = scmp.ne.s32.totalorder %s28, %s29
      %p40 = scmp.eq.s32.totalorder %s20, 0
      %p41 = por %p39, %p40
      %p42 = scmp.ne.s32.totalorder %s28, %s29
      %p43 = scmp.eq.s32.totalorder %s21, 1
      %p44 = por %p42, %p43
      %p46 = scmp.ne.s32.totalorder %s29, %s45
      %p47 = scmp.eq.s32.totalorder %s21, 0
      %p48 = por %p46, %p47
      %s50 = sadd.s32 %s49, 1
      %p53 = scmp.eq.s32.totalorder %s15, 1
      %p54 = scmp.ne.s32.totalorder %s49, %s51
      %p55 = scmp.eq.s32.totalorder %s15, 0
      %p56 = por %p54, %p55
      %p57 = scmp.ne.s32.totalorder %s49, %s51
      %p58 = scmp.eq.s32.totalorder %s20, 1
      %p59 = por %p57, %p58
      %p60 = scmp.ne.s32.totalorder %s51, %s52
      %p61 = scmp.eq.s32.totalorder %s20, 0
      %p62 = por %p60, %p61
      %p63 = scmp.ne.s32.totalorder %s51, %s52
      %p64 = scmp.eq.s32.totalorder %s21, 1
      %p65 = por %p63, %p64
      %p67 = scmp.ne.s32.totalorder %s52, %s66
      %p68 = scmp.eq.s32.totalorder %s21, 0
      %p69 = por %p67, %p68
      %s71 = sadd.s32 %s70, 1
      %p74 = scmp.eq.s32.totalorder %s15, 1
      %p75 = scmp.ne.s32.totalorder %s70, %s72
      %p76 = scmp.eq.s32.totalorder %s15, 0
      %p77 = por %p75, %p76
      %p78 = scmp.ne.s32.totalorder %s70, %s72
      %p79 = scmp.eq.s32.totalorder %s20, 1
      %p80 = por %p78, %p79
      %p81 = scmp.ne.s32.totalorder %s72, %s73
      %p82 = scmp.eq.s32.totalorder %s20, 0
      %p83 = por %p81, %p82
      %p84 = scmp.ne.s32.totalorder %s72, %s73
      %p85 = scmp.eq.s32.totalorder %s21, 1
      %p86 = por %p84, %p85
      %p88 = scmp.ne.s32.totalorder %s73, %s87
      %p89 = scmp.eq.s32.totalorder %s21, 0
      %p90 = por %p88, %p89
      %s92 = sadd.s32 %s91, 1
      %p95 = scmp.eq.s32.totalorder %s15, 1
      %p96 = scmp.ne.s32.totalorder %s91, %s93
      %p97 = scmp.eq.s32.totalorder %s15, 0
      %p98 = por %p96, %p97
      %p99 = scmp.ne.s32.totalorder %s91, %s93
      %p100 = scmp.eq.s32.totalorder %s20, 1
      %p101 = por %p99, %p100
      %p102 = scmp.ne.s32.totalorder %s93, %s94
      %p103 = scmp.eq.s32.totalorder %s20, 0
      %p104 = por %p102, %p103
      %p105 = scmp.ne.s32.totalorder %s93, %s94
      %p106 = scmp.eq.s32.totalorder %s21, 1
      %p107 = por %p105, %p106
      %p109 = scmp.ne.s32.totalorder %s94, %s108
      %p110 = scmp.eq.s32.totalorder %s21, 0
      %p111 = por %p109, %p110
      %s113 = sadd.s32 %s112, 1
      %p116 = scmp.eq.s32.totalorder %s15, 1
      %p117 = scmp.ne.s32.totalorder %s112, %s114
      %p118 = scmp.eq.s32.totalorder %s15, 0
      %p119 = por %p117, %p118
      %p120 = scmp.ne.s32.totalorder %s112, %s114
      %p121 = scmp.eq.s32.totalorder %s20, 1
      %p122 = por %p120, %p121
      %p123 = scmp.ne.s32.totalorder %s114, %s115
      %p124 = scmp.eq.s32.totalorder %s20, 0
      %p125 = por %p123, %p124
      %p126 = scmp.ne.s32.totalorder %s114, %s115
      %p127 = scmp.eq.s32.totalorder %s21, 1
      %p128 = por %p126, %p127
      %p130 = scmp.ne.s32.totalorder %s115, %s129
      %p131 = scmp.eq.s32.totalorder %s21, 0
      %p132 = por %p130, %p131
      %s134 = sadd.s32 %s133, 1
      %p137 = scmp.eq.s32.totalorder %s15, 1
      %p138 = scmp.ne.s32.totalorder %s133, %s135
      %p139 = scmp.eq.s32.totalorder %s15, 0
      %p140 = por %p138, %p139
      %p141 = scmp.ne.s32.totalorder %s133, %s135
      %p142 = scmp.eq.s32.totalorder %s20, 1
      %p143 = por %p141, %p142
      %p144 = scmp.ne.s32.totalorder %s135, %s136
      %p145 = scmp.eq.s32.totalorder %s20, 0
      %p146 = por %p144, %p145
      %p147 = scmp.ne.s32.totalorder %s135, %s136
      %p148 = scmp.eq.s32.totalorder %s21, 1
      %p149 = por %p147, %p148
      %p151 = scmp.ne.s32.totalorder %s136, %s150
      %p152 = scmp.eq.s32.totalorder %s21, 0
      %p153 = por %p151, %p152
      %s155 = sadd.s32 %s154, 1
      %p158 = scmp.eq.s32.totalorder %s15, 1
      %p159 = scmp.ne.s32.totalorder %s154, %s156
      %p160 = scmp.eq.s32.totalorder %s15, 0
      %p161 = por %p159, %p160
      %p162 = scmp.ne.s32.totalorder %s154, %s156
      %p163 = scmp.eq.s32.totalorder %s20, 1
      %p164 = por %p162, %p163
      %p165 = scmp.ne.s32.totalorder %s156, %s157
      %p166 = scmp.eq.s32.totalorder %s20, 0
      %p167 = por %p165, %p166
      %p168 = scmp.ne.s32.totalorder %s156, %s157
      %p169 = scmp.eq.s32.totalorder %s21, 1
      %p170 = por %p168, %p169
      %p172 = scmp.ne.s32.totalorder %s157, %s171
      %p173 = scmp.eq.s32.totalorder %s21, 0
      %p174 = por %p172, %p173
      %s176 = sadd.s32 %s175, 1
      %p179 = scmp.eq.s32.totalorder %s15, 1
      %p180 = scmp.ne.s32.totalorder %s175, %s177
      %p181 = scmp.eq.s32.totalorder %s15, 0
      %p182 = por %p180, %p181
      %p183 = scmp.ne.s32.totalorder %s175, %s177
      %p184 = scmp.eq.s32.totalorder %s20, 1
      %p185 = por %p183, %p184
      %p186 = scmp.ne.s32.totalorder %s177, %s178
      %p187 = scmp.eq.s32.totalorder %s20, 0
      %p188 = por %p186, %p187
      %p189 = scmp.ne.s32.totalorder %s177, %s178
      %p190 = scmp.eq.s32.totalorder %s21, 1
      %p191 = por %p189, %p190
      %p193 = scmp.ne.s32.totalorder %s178, %s192
      %p194 = scmp.eq.s32.totalorder %s21, 0
      %p195 = por %p193, %p194
      %s196 = ssub.s32 %s15, %s22
      %p197 = scmp.eq.s32.totalorder %s196, 0
      %s199 = sadd.s32 %s198, 1
      %s200 = scalar_select %p197, %s198, %s199
      %p203 = pneg %p197
      %p204 = scmp.eq.s32.totalorder %s15, 1
      %p205 = por %p203, %p204
      %p206 = scmp.ne.s32.totalorder %s198, %s201
      %p207 = scmp.eq.s32.totalorder %s15, 0
      %p208 = por %p206, %p207
      %p209 = scmp.ne.s32.totalorder %s198, %s201
      %p210 = scmp.eq.s32.totalorder %s20, 1
      %p211 = por %p209, %p210
      %p212 = scmp.ne.s32.totalorder %s201, %s202
      %p213 = scmp.eq.s32.totalorder %s20, 0
      %p214 = por %p212, %p213
      %p215 = scmp.ne.s32.totalorder %s201, %s202
      %p216 = scmp.eq.s32.totalorder %s21, 1
      %p217 = por %p215, %p216
      %p219 = scmp.ne.s32.totalorder %s202, %s218
      %p220 = scmp.eq.s32.totalorder %s21, 0
      %p221 = por %p219, %p220
      %p222 = scmp.le.s32.totalorder 1, %s15
      %p223 = scmp.lt.s32.totalorder %s15, 3
      %p224 = pnand %p222, %p223
      %p225 = pneg %p224
      // Predicated region
      $region9: #{tpu_custom_call.1} parent=5 // pred_check
        _
      $region10: #{tpu_custom_call.1} parent=5 // pred_check_branch
        %227 = sbr.rel (%p224) target = $region12
      $region11: #{tpu_custom_call.1} parent=5 // pred_region
        %s228 = ssub.s32 %s15, 1
        // Predicated region
        $region13: #{tpu_custom_call.1} parent=11 // pred_check
          %p229 = pneg %p62
        $region14: #{tpu_custom_call.1} parent=11 // pred_check_branch
          %231 = sbr.rel (%p229) target = $region16
        $region15: #{tpu_custom_call.1} parent=11 // pred_region
          %s233 = ssub.s32 512, 512
          %234 = vsyncadd [#allocation3], %s233
          %s235 = sshll.u32 [#allocation2], 4
          %s236 = int_to_ptr.vmem [resolvable:$true] %s235
          %241 = dma.hbm_to_vmem [thread:$0]  %s1, 512, %s236, [#allocation3], 128, 128, 8
        $region16: #{tpu_custom_call.1} parent=11 // pred_fallthru
          _
        // Predicated region
        $region17: #{tpu_custom_call.1} parent=11 // pred_check
          %p242 = pneg %p83
        $region18: #{tpu_custom_call.1} parent=11 // pred_check_branch
          %244 = sbr.rel (%p242) target = $region20
        $region19: #{tpu_custom_call.1} parent=11 // pred_region
          _
        $region20: #{tpu_custom_call.1} parent=11 // pred_fallthru
          _
        // Predicated region
        $region21: #{tpu_custom_call.1} parent=11 // pred_check
          %p245 = pneg %p104
        $region22: #{tpu_custom_call.1} parent=11 // pred_check_branch
          %247 = sbr.rel (%p245) target = $region24
        $region23: #{tpu_custom_call.1} parent=11 // pred_region
          _
        $region24: #{tpu_custom_call.1} parent=11 // pred_fallthru
          _
        // Predicated region
        $region25: #{tpu_custom_call.1} parent=11 // pred_check
          %p248 = pneg %p125
        $region26: #{tpu_custom_call.1} parent=11 // pred_check_branch
          %250 = sbr.rel (%p248) target = $region28
        $region27: #{tpu_custom_call.1} parent=11 // pred_region
          _
        $region28: #{tpu_custom_call.1} parent=11 // pred_fallthru
          _
        // Predicated region
        $region29: #{tpu_custom_call.1} parent=11 // pred_check
          %p251 = pneg %p146
        $region30: #{tpu_custom_call.1} parent=11 // pred_check_branch
          %253 = sbr.rel (%p251) target = $region32
        $region31: #{tpu_custom_call.1} parent=11 // pred_region
          _
        $region32: #{tpu_custom_call.1} parent=11 // pred_fallthru
          _
        // Predicated region
        $region33: #{tpu_custom_call.1} parent=11 // pred_check
          %p254 = pneg %p167
        $region34: #{tpu_custom_call.1} parent=11 // pred_check_branch
          %256 = sbr.rel (%p254) target = $region36
        $region35: #{tpu_custom_call.1} parent=11 // pred_region
          _
        $region36: #{tpu_custom_call.1} parent=11 // pred_fallthru
          _
        // Predicated region
        $region37: #{tpu_custom_call.1} parent=11 // pred_check
          %p257 = pneg %p188
        $region38: #{tpu_custom_call.1} parent=11 // pred_check_branch
          %259 = sbr.rel (%p257) target = $region40
        $region39: #{tpu_custom_call.1} parent=11 // pred_region
          _
        $region40: #{tpu_custom_call.1} parent=11 // pred_fallthru
          _
      $region12: #{tpu_custom_call.1} parent=5 // pred_fallthru
        _
      %p260 = scmp.lt.s32.totalorder %s15, 2
      // Predicated region
      $region41: #{tpu_custom_call.1} parent=5 // pred_check
        %p261 = pneg %p260
      $region42: #{tpu_custom_call.1} parent=5 // pred_check_branch
        %263 = sbr.rel (%p261) target = $region44
      $region43: #{tpu_custom_call.1} parent=5 // pred_region
        // Predicated region
        $region45: #{tpu_custom_call.1} parent=43 // pred_check
          %p264 = pneg %p35
        $region46: #{tpu_custom_call.1} parent=43 // pred_check_branch
          %266 = sbr.rel (%p264) target = $region48
        $region47: #{tpu_custom_call.1} parent=43 // pred_region
          %s267 = smul.u32 32, %s15
          %p268 = scmp.lt.s32.totalorder %s267, 63
          %s269 = scalar_select %p268, %s267, 63
          %s270 = smul.addr %s269, 8
          %s271 = scalar_lea.vmem %s0, %s270
          %s272 = smul.u32 32, %s15
        $region48: #{tpu_custom_call.1} parent=43 // pred_fallthru
          _
      $region44: #{tpu_custom_call.1} parent=5 // pred_fallthru
        _
      %p273 = scmp.le.s32.totalorder 1, %s15
      %p274 = scmp.lt.s32.totalorder %s15, 3
      %p275 = pnand %p273, %p274
      %p276 = pneg %p275
      // Predicated region
      $region49: #{tpu_custom_call.1} parent=5 // pred_check
        _
      $region50: #{tpu_custom_call.1} parent=5 // pred_check_branch
        %278 = sbr.rel (%p275) target = $region52
      $region51: #{tpu_custom_call.1} parent=5 // pred_region
        %s279 = ssub.s32 %s15, 1
        // Predicated region
        $region53: #{tpu_custom_call.1} parent=51 // pred_check
          %p280 = pneg %p62
        $region54: #{tpu_custom_call.1} parent=51 // pred_check_branch
          %282 = sbr.rel (%p280) target = $region56
        $region55: #{tpu_custom_call.1} parent=51 // pred_region
          %283 = dma.done [#allocation3], 512
        $region56: #{tpu_custom_call.1} parent=51 // pred_fallthru
          _
        %s284 = smul.u32 32, %s20
        %p285 = scmp.lt.s32.totalorder %s284, 63
        %s286 = scalar_select %p285, %s284, 63
        %s287 = smul.addr %s286, 8
        %s288 = scalar_lea.vmem %s0, %s287
        %p289 = pneg %p41
        %p290 = pneg %p38
        %p291 = pneg %p62
        %p292 = pneg %p59
        %p293 = pneg %p83
        %p294 = pneg %p80
        %p295 = pneg %p104
        %p296 = pneg %p101
        %p297 = pneg %p125
        %p298 = pneg %p122
        %p299 = pneg %p146
        %p300 = pneg %p143
        %p301 = pneg %p167
        %p302 = pneg %p164
        %p303 = pneg %p188
        %p304 = pneg %p185
        %p305 = pneg %p214
        %p306 = pneg %p211
        %s307 = smul.u32 32, %s20
        %p308 = scmp.lt.s32.totalorder %s307, 63
        %s309 = scalar_select %p308, %s307, 63
        %s310 = smul.addr %s309, 8
        %s311 = scalar_lea.vmem %s8, %s310
        %s312 = smul.u32 32, %s20
        %p313 = scmp.lt.s32.totalorder %s312, 63
        %s314 = scalar_select %p313, %s312, 63
        %s315 = smul.addr %s314, 8
        %s316 = scalar_lea.vmem %s0, %s315
        %s317 = smul.u32 32, %s20
        %s318 = smul.u32 32, %s20
        %p319 = scmp.lt.s32.totalorder %s318, 63
        %s320 = scalar_select %p319, %s318, 63
        %s321 = smul.addr %s320, 8
        %s322 = scalar_lea.vmem %s8, %s321
        %s323 = smul.u32 32, %s20
        %v325 = vld [vmem:[%s316] sm:$0xff]
        %v326 = vld [vmem:[%s316 + $0x8] sm:$0xff]
        %v327 = vld [vmem:[%s316 + $0x10] sm:$0xff]
        %v328 = vld [vmem:[%s316 + $0x18] sm:$0xff]
        %v329 = vld [vmem:[%s316 + $0x20] sm:$0xff]
        %v330 = vld [vmem:[%s316 + $0x28] sm:$0xff]
        %v331 = vld [vmem:[%s316 + $0x30] sm:$0xff]
        %v332 = vld [vmem:[%s316 + $0x38] sm:$0xff]
        %v333 = vld [vmem:[%s316 + $0x40] sm:$0xff]
        %v334 = vld [vmem:[%s316 + $0x48] sm:$0xff]
        %v335 = vld [vmem:[%s316 + $0x50] sm:$0xff]
        %v336 = vld [vmem:[%s316 + $0x58] sm:$0xff]
        %v337 = vld [vmem:[%s316 + $0x60] sm:$0xff]
        %v338 = vld [vmem:[%s316 + $0x68] sm:$0xff]
        %v339 = vld [vmem:[%s316 + $0x70] sm:$0xff]
        %v340 = vld [vmem:[%s316 + $0x78] sm:$0xff]
        %v341 = vld [vmem:[%s316 + $0x80] sm:$0xff]
        %v342 = vld [vmem:[%s316 + $0x88] sm:$0xff]
        %v343 = vld [vmem:[%s316 + $0x90] sm:$0xff]
        %v344 = vld [vmem:[%s316 + $0x98] sm:$0xff]
        %v345 = vld [vmem:[%s316 + $0xa0] sm:$0xff]
        %v346 = vld [vmem:[%s316 + $0xa8] sm:$0xff]
        %v347 = vld [vmem:[%s316 + $0xb0] sm:$0xff]
        %v348 = vld [vmem:[%s316 + $0xb8] sm:$0xff]
        %v349 = vld [vmem:[%s316 + $0xc0] sm:$0xff]
        %v350 = vld [vmem:[%s316 + $0xc8] sm:$0xff]
        %v351 = vld [vmem:[%s316 + $0xd0] sm:$0xff]
        %v352 = vld [vmem:[%s316 + $0xd8] sm:$0xff]
        %v353 = vld [vmem:[%s316 + $0xe0] sm:$0xff]
        %v354 = vld [vmem:[%s316 + $0xe8] sm:$0xff]
        %v355 = vld [vmem:[%s316 + $0xf0] sm:$0xff]
        %v356 = vld [vmem:[%s316 + $0xf8] sm:$0xff]
        %v357 = vpack.c.bf16 %v326, %v325
        %v358 = vpack.c.bf16 %v328, %v327
        %v359 = vpack.c.bf16 %v330, %v329
        %v360 = vpack.c.bf16 %v332, %v331
        %v361 = vpack.c.bf16 %v334, %v333
        %v362 = vpack.c.bf16 %v336, %v335
        %v363 = vpack.c.bf16 %v338, %v337
        %v364 = vpack.c.bf16 %v340, %v339
        %v365 = vpack.c.bf16 %v342, %v341
        %v366 = vpack.c.bf16 %v344, %v343
        %v367 = vpack.c.bf16 %v346, %v345
        %v368 = vpack.c.bf16 %v348, %v347
        %v369 = vpack.c.bf16 %v350, %v349
        %v370 = vpack.c.bf16 %v352, %v351
        %v371 = vpack.c.bf16 %v354, %v353
        %v372 = vpack.c.bf16 %v356, %v355
        %v373 = vld [vmem:[#allocation2] sm:$0xff]
        %v374 = vld [vmem:[#allocation2 + $0x8] sm:$0xff]
        %v375 = vld [vmem:[#allocation2 + $0x10] sm:$0xff]
        %v376 = vld [vmem:[#allocation2 + $0x18] sm:$0xff]
        %v377 = vld [vmem:[%s2] sm:$0x3]
        %v379 = vlaneseq
        %v380 = vshrl.u32 %v379, 7
        %v381 = vsub.s32 0, %v380
        %v382 = vrot.slane %v377, %v381
        %v383 = vlaneseq
        %v384 = vshrl.u32 %v383, 7
        %v385 = vsub.s32 1, %v384
        %v386 = vrot.slane %v377, %v385
        %v393 = vunpack.c.l.b16 %v373
        %v394 = vunpack.c.h.b16 %v373
        %v395 = vunpack.c.l.b16 %v374
        %v396 = vunpack.c.h.b16 %v374
        %v397 = vunpack.c.l.b16 %v375
        %v398 = vunpack.c.h.b16 %v375
        %v399 = vunpack.c.l.b16 %v376
        %v400 = vunpack.c.h.b16 %v376
        %v401 = vpack.c.b16 %v395, %v393
        %v402 = vpack.c.b16 %v396, %v394
        %v403 = vpack.c.b16 %v399, %v397
        %v404 = vpack.c.b16 %v400, %v398
        %vm409 = vcmask 261120
        %v411 = vsel %vm409, %v357, 0
        %v414 = vsel %vm409, %v358, 0
        %v417 = vsel %vm409, %v359, 0
        %v420 = vsel %vm409, %v360, 0
        %v423 = vsel %vm409, %v361, 0
        %v426 = vsel %vm409, %v362, 0
        %v429 = vsel %vm409, %v363, 0
        %v432 = vsel %vm409, %v364, 0
        %v435 = vsel %vm409, %v365, 0
        %v438 = vsel %vm409, %v366, 0
        %v441 = vsel %vm409, %v367, 0
        %v444 = vsel %vm409, %v368, 0
        %v447 = vsel %vm409, %v369, 0
        %v450 = vsel %vm409, %v370, 0
        %v453 = vsel %vm409, %v371, 0
        %v456 = vsel %vm409, %v372, 0
        %458 = vmatprep.subr.bf16.mxu0 %v402
        %459 = vmatpush1.bf16.msra.mxu0 %v401
        %460 = vmatprep.subr.bf16.mxu0 %v404
        %461 = vmatpush1.bf16.msra.mxu0 %v403
        %462 = vmatprep.subr.bf16.mxu0 0
        %463 = vmatpush1.bf16.msra.mxu0 0
        %464 = vmatprep.subr.bf16.mxu0 0
        %465 = vmatpush1.bf16.msra.mxu0 0
        %466 = vmatprep.subr.bf16.mxu0 0
        %467 = vmatpush1.bf16.msra.mxu0 0
        %468 = vmatprep.subr.bf16.mxu0 0
        %469 = vmatpush1.bf16.msra.mxu0 0
        %470 = vmatprep.subr.bf16.mxu0 0
        %471 = vmatpush1.bf16.msra.mxu0 0
        %472 = vmatprep.subr.bf16.mxu0 0
        %473 = vmatpush1.bf16.msra.mxu0 0
        %474 = vmatprep.subr.bf16.mxu0 0
        %475 = vmatpush1.bf16.msra.mxu0 0
        %476 = vmatprep.subr.bf16.mxu0 0
        %477 = vmatpush1.bf16.msra.mxu0 0
        %478 = vmatprep.subr.bf16.mxu0 0
        %479 = vmatpush1.bf16.msra.mxu0 0
        %480 = vmatprep.subr.bf16.mxu0 0
        %481 = vmatpush1.bf16.msra.mxu0 0
        %482 = vmatprep.subr.bf16.mxu0 0
        %483 = vmatpush1.bf16.msra.mxu0 0
        %484 = vmatprep.subr.bf16.mxu0 0
        %485 = vmatpush1.bf16.msra.mxu0 0
        %486 = vmatprep.subr.bf16.mxu0 0
        %487 = vmatpush1.bf16.msra.mxu0 0
        %488 = vmatprep.subr.bf16.mxu0 0
        %489 = vmatpush1.bf16.msra.mxu0 0
        %490 = vmatprep.mubr.bf16.mxu0 0
        %491 = vmatmul.mubr.bf16.gmra.mrb[0].mxu0 %v411
        %v492 = vpop.f32.mrb[0].mxu0
        %v493 = vadd.f32 %v382, %v492
        %v494 = vpop.f32.mrb[0].mxu0
        %v495 = vadd.f32 %v386, %v494
        %v496 = vpop.f32.mrb[0].mxu0
        %v497 = vadd.f32 %v382, %v496
        %v498 = vpop.f32.mrb[0].mxu0
        %v499 = vadd.f32 %v386, %v498
        %500 = vmatprep.mubr.bf16.mxu0 0
        %501 = vmatmul.mubr.bf16.gmra.mrb[0].mxu0 %v414
        %v502 = vpop.f32.mrb[0].mxu0
        %v503 = vadd.f32 %v382, %v502
        %v504 = vpop.f32.mrb[0].mxu0
        %v505 = vadd.f32 %v386, %v504
        %v506 = vpop.f32.mrb[0].mxu0
        %v507 = vadd.f32 %v382, %v506
        %v508 = vpop.f32.mrb[0].mxu0
        %v509 = vadd.f32 %v386, %v508
        %510 = vmatprep.mubr.bf16.mxu0 0
        %511 = vmatmul.mubr.bf16.gmra.mrb[0].mxu0 %v417
        %v512 = vpop.f32.mrb[0].mxu0
        %v513 = vadd.f32 %v382, %v512
        %v514 = vpop.f32.mrb[0].mxu0
        %v515 = vadd.f32 %v386, %v514
        %v516 = vpop.f32.mrb[0].mxu0
        %v517 = vadd.f32 %v382, %v516
        %v518 = vpop.f32.mrb[0].mxu0
        %v519 = vadd.f32 %v386, %v518
        %520 = vmatprep.mubr.bf16.mxu0 0
        %521 = vmatmul.mubr.bf16.gmra.mrb[0].mxu0 %v420
        %v522 = vpop.f32.mrb[0].mxu0
        %v523 = vadd.f32 %v382, %v522
        %v524 = vpop.f32.mrb[0].mxu0
        %v525 = vadd.f32 %v386, %v524
        %v526 = vpop.f32.mrb[0].mxu0
        %v527 = vadd.f32 %v382, %v526
        %v528 = vpop.f32.mrb[0].mxu0
        %v529 = vadd.f32 %v386, %v528
        %530 = vmatprep.mubr.bf16.mxu0 0
        %531 = vmatmul.mubr.bf16.gmra.mrb[0].mxu0 %v423
        %v532 = vpop.f32.mrb[0].mxu0
        %v533 = vadd.f32 %v382, %v532
        %v534 = vpop.f32.mrb[0].mxu0
        %v535 = vadd.f32 %v386, %v534
        %v536 = vpop.f32.mrb[0].mxu0
        %v537 = vadd.f32 %v382, %v536
        %v538 = vpop.f32.mrb[0].mxu0
        %v539 = vadd.f32 %v386, %v538
        %540 = vmatprep.mubr.bf16.mxu0 0
        %541 = vmatmul.mubr.bf16.gmra.mrb[0].mxu0 %v426
        %v542 = vpop.f32.mrb[0].mxu0
        %v543 = vadd.f32 %v382, %v542
        %v544 = vpop.f32.mrb[0].mxu0
        %v545 = vadd.f32 %v386, %v544
        %v546 = vpop.f32.mrb[0].mxu0
        %v547 = vadd.f32 %v382, %v546
        %v548 = vpop.f32.mrb[0].mxu0
        %v549 = vadd.f32 %v386, %v548
        %550 = vmatprep.mubr.bf16.mxu0 0
        %551 = vmatmul.mubr.bf16.gmra.mrb[0].mxu0 %v429
        %v552 = vpop.f32.mrb[0].mxu0
        %v553 = vadd.f32 %v382, %v552
        %v554 = vpop.f32.mrb[0].mxu0
        %v555 = vadd.f32 %v386, %v554
        %v556 = vpop.f32.mrb[0].mxu0
        %v557 = vadd.f32 %v382, %v556
        %v558 = vpop.f32.mrb[0].mxu0
        %v559 = vadd.f32 %v386, %v558
        %560 = vmatprep.mubr.bf16.mxu0 0
        %561 = vmatmul.mubr.bf16.gmra.mrb[0].mxu0 %v432
        %v562 = vpop.f32.mrb[0].mxu0
        %v563 = vadd.f32 %v382, %v562
        %v564 = vpop.f32.mrb[0].mxu0
        %v565 = vadd.f32 %v386, %v564
        %v566 = vpop.f32.mrb[0].mxu0
        %v567 = vadd.f32 %v382, %v566
        %v568 = vpop.f32.mrb[0].mxu0
        %v569 = vadd.f32 %v386, %v568
        %570 = vmatprep.mubr.bf16.mxu0 0
        %571 = vmatmul.mubr.bf16.gmra.mrb[0].mxu0 %v435
        %v572 = vpop.f32.mrb[0].mxu0
        %v573 = vadd.f32 %v382, %v572
        %v574 = vpop.f32.mrb[0].mxu0
        %v575 = vadd.f32 %v386, %v574
        %v576 = vpop.f32.mrb[0].mxu0
        %v577 = vadd.f32 %v382, %v576
        %v578 = vpop.f32.mrb[0].mxu0
        %v579 = vadd.f32 %v386, %v578
        %580 = vmatprep.mubr.bf16.mxu0 0
        %581 = vmatmul.mubr.bf16.gmra.mrb[0].mxu0 %v438
        %v582 = vpop.f32.mrb[0].mxu0
        %v583 = vadd.f32 %v382, %v582
        %v584 = vpop.f32.mrb[0].mxu0
        %v585 = vadd.f32 %v386, %v584
        %v586 = vpop.f32.mrb[0].mxu0
        %v587 = vadd.f32 %v382, %v586
        %v588 = vpop.f32.mrb[0].mxu0
        %v589 = vadd.f32 %v386, %v588
        %590 = vmatprep.mubr.bf16.mxu0 0
        %591 = vmatmul.mubr.bf16.gmra.mrb[0].mxu0 %v441
        %v592 = vpop.f32.mrb[0].mxu0
        %v593 = vadd.f32 %v382, %v592
        %v594 = vpop.f32.mrb[0].mxu0
        %v595 = vadd.f32 %v386, %v594
        %v596 = vpop.f32.mrb[0].mxu0
        %v597 = vadd.f32 %v382, %v596
        %v598 = vpop.f32.mrb[0].mxu0
        %v599 = vadd.f32 %v386, %v598
        %600 = vmatprep.mubr.bf16.mxu0 0
        %601 = vmatmul.mubr.bf16.gmra.mrb[0].mxu0 %v444
        %v602 = vpop.f32.mrb[0].mxu0
        %v603 = vadd.f32 %v382, %v602
        %v604 = vpop.f32.mrb[0].mxu0
        %v605 = vadd.f32 %v386, %v604
        %v606 = vpop.f32.mrb[0].mxu0
        %v607 = vadd.f32 %v382, %v606
        %v608 = vpop.f32.mrb[0].mxu0
        %v609 = vadd.f32 %v386, %v608
        %610 = vmatprep.mubr.bf16.mxu0 0
        %611 = vmatmul.mubr.bf16.gmra.mrb[0].mxu0 %v447
        %v612 = vpop.f32.mrb[0].mxu0
        %v613 = vadd.f32 %v382, %v612
        %v614 = vpop.f32.mrb[0].mxu0
        %v615 = vadd.f32 %v386, %v614
        %v616 = vpop.f32.mrb[0].mxu0
        %v617 = vadd.f32 %v382, %v616
        %v618 = vpop.f32.mrb[0].mxu0
        %v619 = vadd.f32 %v386, %v618
        %620 = vmatprep.mubr.bf16.mxu0 0
        %621 = vmatmul.mubr.bf16.gmra.mrb[0].mxu0 %v450
        %v622 = vpop.f32.mrb[0].mxu0
        %v623 = vadd.f32 %v382, %v622
        %v624 = vpop.f32.mrb[0].mxu0
        %v625 = vadd.f32 %v386, %v624
        %v626 = vpop.f32.mrb[0].mxu0
        %v627 = vadd.f32 %v382, %v626
        %v628 = vpop.f32.mrb[0].mxu0
        %v629 = vadd.f32 %v386, %v628
        %630 = vmatprep.mubr.bf16.mxu0 0
        %631 = vmatmul.mubr.bf16.gmra.mrb[0].mxu0 %v453
        %v632 = vpop.f32.mrb[0].mxu0
        %v633 = vadd.f32 %v382, %v632
        %v634 = vpop.f32.mrb[0].mxu0
        %v635 = vadd.f32 %v386, %v634
        %v636 = vpop.f32.mrb[0].mxu0
        %v637 = vadd.f32 %v382, %v636
        %v638 = vpop.f32.mrb[0].mxu0
        %v639 = vadd.f32 %v386, %v638
        %640 = vmatprep.mubr.bf16.mxu0 0
        %641 = vmatmul.mubr.bf16.gmra.mrb[0].mxu0 %v456
        %v642 = vpop.f32.mrb[0].mxu0
        %v643 = vadd.f32 %v382, %v642
        %v644 = vpop.f32.mrb[0].mxu0
        %v645 = vadd.f32 %v386, %v644
        %v646 = vpop.f32.mrb[0].mxu0
        %v647 = vadd.f32 %v382, %v646
        %v648 = vpop.f32.mrb[0].mxu0
        %v649 = vadd.f32 %v386, %v648
        %650 = vdwg.mxu0
        %v651 = vmax.f32 %v493, 0.0
        %v652 = vmax.f32 %v495, 0.0
        %v653 = vmax.f32 %v497, 0.0
        %v654 = vmax.f32 %v499, 0.0
        %v655 = vmax.f32 %v503, 0.0
        %v656 = vmax.f32 %v505, 0.0
        %v657 = vmax.f32 %v507, 0.0
        %v658 = vmax.f32 %v509, 0.0
        %v659 = vmax.f32 %v513, 0.0
        %v660 = vmax.f32 %v515, 0.0
        %v661 = vmax.f32 %v517, 0.0
        %v662 = vmax.f32 %v519, 0.0
        %v663 = vmax.f32 %v523, 0.0
        %v664 = vmax.f32 %v525, 0.0
        %v665 = vmax.f32 %v527, 0.0
        %v666 = vmax.f32 %v529, 0.0
        %v667 = vmax.f32 %v533, 0.0
        %v668 = vmax.f32 %v535, 0.0
        %v669 = vmax.f32 %v537, 0.0
        %v670 = vmax.f32 %v539, 0.0
        %v671 = vmax.f32 %v543, 0.0
        %v672 = vmax.f32 %v545, 0.0
        %v673 = vmax.f32 %v547, 0.0
        %v674 = vmax.f32 %v549, 0.0
        %v675 = vmax.f32 %v553, 0.0
        %v676 = vmax.f32 %v555, 0.0
        %v677 = vmax.f32 %v557, 0.0
        %v678 = vmax.f32 %v559, 0.0
        %v679 = vmax.f32 %v563, 0.0
        %v680 = vmax.f32 %v565, 0.0
        %v681 = vmax.f32 %v567, 0.0
        %v682 = vmax.f32 %v569, 0.0
        %v683 = vmax.f32 %v573, 0.0
        %v684 = vmax.f32 %v575, 0.0
        %v685 = vmax.f32 %v577, 0.0
        %v686 = vmax.f32 %v579, 0.0
        %v687 = vmax.f32 %v583, 0.0
        %v688 = vmax.f32 %v585, 0.0
        %v689 = vmax.f32 %v587, 0.0
        %v690 = vmax.f32 %v589, 0.0
        %v691 = vmax.f32 %v593, 0.0
        %v692 = vmax.f32 %v595, 0.0
        %v693 = vmax.f32 %v597, 0.0
        %v694 = vmax.f32 %v599, 0.0
        %v695 = vmax.f32 %v603, 0.0
        %v696 = vmax.f32 %v605, 0.0
        %v697 = vmax.f32 %v607, 0.0
        %v698 = vmax.f32 %v609, 0.0
        %v699 = vmax.f32 %v613, 0.0
        %v700 = vmax.f32 %v615, 0.0
        %v701 = vmax.f32 %v617, 0.0
        %v702 = vmax.f32 %v619, 0.0
        %v703 = vmax.f32 %v623, 0.0
        %v704 = vmax.f32 %v625, 0.0
        %v705 = vmax.f32 %v627, 0.0
        %v706 = vmax.f32 %v629, 0.0
        %v707 = vmax.f32 %v633, 0.0
        %v708 = vmax.f32 %v635, 0.0
        %v709 = vmax.f32 %v637, 0.0
        %v710 = vmax.f32 %v639, 0.0
        %v711 = vmax.f32 %v643, 0.0
        %v712 = vmax.f32 %v645, 0.0
        %v713 = vmax.f32 %v647, 0.0
        %v714 = vmax.f32 %v649, 0.0
        %v715 = vpack.c.bf16 %v653, %v651
        %v716 = vpack.c.bf16 %v654, %v652
        %v717 = vpack.c.bf16 %v657, %v655
        %v718 = vpack.c.bf16 %v658, %v656
        %v719 = vpack.c.bf16 %v661, %v659
        %v720 = vpack.c.bf16 %v662, %v660
        %v721 = vpack.c.bf16 %v665, %v663
        %v722 = vpack.c.bf16 %v666, %v664
        %v723 = vpack.c.bf16 %v669, %v667
        %v724 = vpack.c.bf16 %v670, %v668
        %v725 = vpack.c.bf16 %v673, %v671
        %v726 = vpack.c.bf16 %v674, %v672
        %v727 = vpack.c.bf16 %v677, %v675
        %v728 = vpack.c.bf16 %v678, %v676
        %v729 = vpack.c.bf16 %v681, %v679
        %v730 = vpack.c.bf16 %v682, %v680
        %v731 = vpack.c.bf16 %v685, %v683
        %v732 = vpack.c.bf16 %v686, %v684
        %v733 = vpack.c.bf16 %v689, %v687
        %v734 = vpack.c.bf16 %v690, %v688
        %v735 = vpack.c.bf16 %v693, %v691
        %v736 = vpack.c.bf16 %v694, %v692
        %v737 = vpack.c.bf16 %v697, %v695
        %v738 = vpack.c.bf16 %v698, %v696
        %v739 = vpack.c.bf16 %v701, %v699
        %v740 = vpack.c.bf16 %v702, %v700
        %v741 = vpack.c.bf16 %v705, %v703
        %v742 = vpack.c.bf16 %v706, %v704
        %v743 = vpack.c.bf16 %v709, %v707
        %v744 = vpack.c.bf16 %v710, %v708
        %v745 = vpack.c.bf16 %v713, %v711
        %v746 = vpack.c.bf16 %v714, %v712
        %v747 = vld [vmem:[%s3] sm:$0xff]
        %v748 = vld [vmem:[%s3 + $0x8] sm:$0xff]
        %v749 = vld [vmem:[%s3 + $0x10] sm:$0xff]
        %v750 = vld [vmem:[%s3 + $0x18] sm:$0xff]
        %v751 = vld [vmem:[%s3 + $0x20] sm:$0xff]
        %v752 = vld [vmem:[%s3 + $0x28] sm:$0xff]
        %v753 = vld [vmem:[%s3 + $0x30] sm:$0xff]
        %v754 = vld [vmem:[%s3 + $0x38] sm:$0xff]
        %v755 = vld [vmem:[%s3 + $0x40] sm:$0xff]
        %v756 = vld [vmem:[%s3 + $0x48] sm:$0xff]
        %v757 = vld [vmem:[%s3 + $0x50] sm:$0xff]
        %v758 = vld [vmem:[%s3 + $0x58] sm:$0xff]
        %v759 = vld [vmem:[%s3 + $0x60] sm:$0xff]
        %v760 = vld [vmem:[%s3 + $0x68] sm:$0xff]
        %v761 = vld [vmem:[%s3 + $0x70] sm:$0xff]
        %v762 = vld [vmem:[%s3 + $0x78] sm:$0xff]
        %v763 = vld [vmem:[%s3 + $0x80] sm:$0xff]
        %v764 = vld [vmem:[%s3 + $0x88] sm:$0xff]
        %v765 = vld [vmem:[%s3 + $0x90] sm:$0xff]
        %v766 = vld [vmem:[%s3 + $0x98] sm:$0xff]
        %v767 = vld [vmem:[%s3 + $0xa0] sm:$0xff]
        %v768 = vld [vmem:[%s3 + $0xa8] sm:$0xff]
        %v769 = vld [vmem:[%s3 + $0xb0] sm:$0xff]
        %v770 = vld [vmem:[%s3 + $0xb8] sm:$0xff]
        %v771 = vld [vmem:[%s3 + $0xc0] sm:$0xff]
        %v772 = vld [vmem:[%s3 + $0xc8] sm:$0xff]
        %v773 = vld [vmem:[%s3 + $0xd0] sm:$0xff]
        %v774 = vld [vmem:[%s3 + $0xd8] sm:$0xff]
        %v775 = vld [vmem:[%s3 + $0xe0] sm:$0xff]
        %v776 = vld [vmem:[%s3 + $0xe8] sm:$0xff]
        %v777 = vld [vmem:[%s3 + $0xf0] sm:$0xff]
        %v778 = vld [vmem:[%s3 + $0xf8] sm:$0xff]
        %v779 = vld [vmem:[%s4] sm:$0x3]
        %v781 = vlaneseq
        %v782 = vshrl.u32 %v781, 7
        %v783 = vsub.s32 0, %v782
        %v784 = vrot.slane %v779, %v783
        %v785 = vlaneseq
        %v786 = vshrl.u32 %v785, 7
        %v787 = vsub.s32 1, %v786
        %v788 = vrot.slane %v779, %v787
        %v823 = vunpack.c.l.b16 %v747
        %v824 = vunpack.c.h.b16 %v747
        %v825 = vunpack.c.l.b16 %v748
        %v826 = vunpack.c.h.b16 %v748
        %v827 = vunpack.c.l.b16 %v749
        %v828 = vunpack.c.h.b16 %v749
        %v829 = vunpack.c.l.b16 %v750
        %v830 = vunpack.c.h.b16 %v750
        %v831 = vunpack.c.l.b16 %v751
        %v832 = vunpack.c.h.b16 %v751
        %v833 = vunpack.c.l.b16 %v752
        %v834 = vunpack.c.h.b16 %v752
        %v835 = vunpack.c.l.b16 %v753
        %v836 = vunpack.c.h.b16 %v753
        %v837 = vunpack.c.l.b16 %v754
        %v838 = vunpack.c.h.b16 %v754
        %v839 = vunpack.c.l.b16 %v755
        %v840 = vunpack.c.h.b16 %v755
        %v841 = vunpack.c.l.b16 %v756
        %v842 = vunpack.c.h.b16 %v756
        %v843 = vunpack.c.l.b16 %v757
        %v844 = vunpack.c.h.b16 %v757
        %v845 = vunpack.c.l.b16 %v758
        %v846 = vunpack.c.h.b16 %v758
        %v847 = vunpack.c.l.b16 %v759
        %v848 = vunpack.c.h.b16 %v759
        %v849 = vunpack.c.l.b16 %v760
        %v850 = vunpack.c.h.b16 %v760
        %v851 = vunpack.c.l.b16 %v761
        %v852 = vunpack.c.h.b16 %v761
        %v853 = vunpack.c.l.b16 %v762
        %v854 = vunpack.c.h.b16 %v762
        %v855 = vunpack.c.l.b16 %v763
        %v856 = vunpack.c.h.b16 %v763
        %v857 = vunpack.c.l.b16 %v764
        %v858 = vunpack.c.h.b16 %v764
        %v859 = vunpack.c.l.b16 %v765
        %v860 = vunpack.c.h.b16 %v765
        %v861 = vunpack.c.l.b16 %v766
        %v862 = vunpack.c.h.b16 %v766
        %v863 = vunpack.c.l.b16 %v767
        %v864 = vunpack.c.h.b16 %v767
        %v865 = vunpack.c.l.b16 %v768
        %v866 = vunpack.c.h.b16 %v768
        %v867 = vunpack.c.l.b16 %v769
        %v868 = vunpack.c.h.b16 %v769
        %v869 = vunpack.c.l.b16 %v770
        %v870 = vunpack.c.h.b16 %v770
        %v871 = vunpack.c.l.b16 %v771
        %v872 = vunpack.c.h.b16 %v771
        %v873 = vunpack.c.l.b16 %v772
        %v874 = vunpack.c.h.b16 %v772
        %v875 = vunpack.c.l.b16 %v773
        %v876 = vunpack.c.h.b16 %v773
        %v877 = vunpack.c.l.b16 %v774
        %v878 = vunpack.c.h.b16 %v774
        %v879 = vunpack.c.l.b16 %v775
        %v880 = vunpack.c.h.b16 %v775
        %v881 = vunpack.c.l.b16 %v776
        %v882 = vunpack.c.h.b16 %v776
        %v883 = vunpack.c.l.b16 %v777
        %v884 = vunpack.c.h.b16 %v777
        %v885 = vunpack.c.l.b16 %v778
        %v886 = vunpack.c.h.b16 %v778
        %v887 = vpack.c.b16 %v825, %v823
        %v888 = vpack.c.b16 %v826, %v824
        %v889 = vpack.c.b16 %v829, %v827
        %v890 = vpack.c.b16 %v830, %v828
        %v891 = vpack.c.b16 %v833, %v831
        %v892 = vpack.c.b16 %v834, %v832
        %v893 = vpack.c.b16 %v837, %v835
        %v894 = vpack.c.b16 %v838, %v836
        %v895 = vpack.c.b16 %v841, %v839
        %v896 = vpack.c.b16 %v842, %v840
        %v897 = vpack.c.b16 %v845, %v843
        %v898 = vpack.c.b16 %v846, %v844
        %v899 = vpack.c.b16 %v849, %v847
        %v900 = vpack.c.b16 %v850, %v848
        %v901 = vpack.c.b16 %v853, %v851
        %v902 = vpack.c.b16 %v854, %v852
        %v903 = vpack.c.b16 %v857, %v855
        %v904 = vpack.c.b16 %v858, %v856
        %v905 = vpack.c.b16 %v861, %v859
        %v906 = vpack.c.b16 %v862, %v860
        %v907 = vpack.c.b16 %v865, %v863
        %v908 = vpack.c.b16 %v866, %v864
        %v909 = vpack.c.b16 %v869, %v867
        %v910 = vpack.c.b16 %v870, %v868
        %v911 = vpack.c.b16 %v873, %v871
        %v912 = vpack.c.b16 %v874, %v872
        %v913 = vpack.c.b16 %v877, %v875
        %v914 = vpack.c.b16 %v878, %v876
        %v915 = vpack.c.b16 %v881, %v879
        %v916 = vpack.c.b16 %v882, %v880
        %v917 = vpack.c.b16 %v885, %v883
        %v918 = vpack.c.b16 %v886, %v884
        %951 = vmatprep.subr.bf16.mxu0 %v888
        %952 = vmatpush1.bf16.msra.mxu0 %v887
        %953 = vmatprep.subr.bf16.mxu0 %v890
        %954 = vmatpush1.bf16.msra.mxu0 %v889
        %955 = vmatprep.subr.bf16.mxu0 %v892
        %956 = vmatpush1.bf16.msra.mxu0 %v891
        %957 = vmatprep.subr.bf16.mxu0 %v894
        %958 = vmatpush1.bf16.msra.mxu0 %v893
        %959 = vmatprep.subr.bf16.mxu0 %v896
        %960 = vmatpush1.bf16.msra.mxu0 %v895
        %961 = vmatprep.subr.bf16.mxu0 %v898
        %962 = vmatpush1.bf16.msra.mxu0 %v897
        %963 = vmatprep.subr.bf16.mxu0 %v900
        %964 = vmatpush1.bf16.msra.mxu0 %v899
        %965 = vmatprep.subr.bf16.mxu0 %v902
        %966 = vmatpush1.bf16.msra.mxu0 %v901
        %967 = vmatprep.subr.bf16.mxu0 %v904
        %968 = vmatpush1.bf16.msra.mxu0 %v903
        %969 = vmatprep.subr.bf16.mxu0 %v906
        %970 = vmatpush1.bf16.msra.mxu0 %v905
        %971 = vmatprep.subr.bf16.mxu0 %v908
        %972 = vmatpush1.bf16.msra.mxu0 %v907
        %973 = vmatprep.subr.bf16.mxu0 %v910
        %974 = vmatpush1.bf16.msra.mxu0 %v909
        %975 = vmatprep.subr.bf16.mxu0 %v912
        %976 = vmatpush1.bf16.msra.mxu0 %v911
        %977 = vmatprep.subr.bf16.mxu0 %v914
        %978 = vmatpush1.bf16.msra.mxu0 %v913
        %979 = vmatprep.subr.bf16.mxu0 %v916
        %980 = vmatpush1.bf16.msra.mxu0 %v915
        %981 = vmatprep.subr.bf16.mxu0 %v918
        %982 = vmatpush1.bf16.msra.mxu0 %v917
        %983 = vmatprep.mubr.bf16.mxu0 %v716
        %984 = vmatmul.mubr.bf16.gmra.mrb[0].mxu0 %v715
        %v985 = vpop.f32.mrb[0].mxu0
        %v986 = vadd.f32 %v784, %v985
        %v987 = vpop.f32.mrb[0].mxu0
        %v988 = vadd.f32 %v788, %v987
        %v989 = vpop.f32.mrb[0].mxu0
        %v990 = vadd.f32 %v784, %v989
        %v991 = vpop.f32.mrb[0].mxu0
        %v992 = vadd.f32 %v788, %v991
        %993 = vmatprep.mubr.bf16.mxu0 %v718
        %994 = vmatmul.mubr.bf16.gmra.mrb[0].mxu0 %v717
        %v995 = vpop.f32.mrb[0].mxu0
        %v996 = vadd.f32 %v784, %v995
        %v997 = vpop.f32.mrb[0].mxu0
        %v998 = vadd.f32 %v788, %v997
        %v999 = vpop.f32.mrb[0].mxu0
        %v1000 = vadd.f32 %v784, %v999
        %v1001 = vpop.f32.mrb[0].mxu0
        %v1002 = vadd.f32 %v788, %v1001
        %1003 = vmatprep.mubr.bf16.mxu0 %v720
        %1004 = vmatmul.mubr.bf16.gmra.mrb[0].mxu0 %v719
        %v1005 = vpop.f32.mrb[0].mxu0
        %v1006 = vadd.f32 %v784, %v1005
        %v1007 = vpop.f32.mrb[0].mxu0
        %v1008 = vadd.f32 %v788, %v1007
        %v1009 = vpop.f32.mrb[0].mxu0
        %v1010 = vadd.f32 %v784, %v1009
        %v1011 = vpop.f32.mrb[0].mxu0
        %v1012 = vadd.f32 %v788, %v1011
        %1013 = vmatprep.mubr.bf16.mxu0 %v722
        %1014 = vmatmul.mubr.bf16.gmra.mrb[0].mxu0 %v721
        %v1015 = vpop.f32.mrb[0].mxu0
        %v1016 = vadd.f32 %v784, %v1015
        %v1017 = vpop.f32.mrb[0].mxu0
        %v1018 = vadd.f32 %v788, %v1017
        %v1019 = vpop.f32.mrb[0].mxu0
        %v1020 = vadd.f32 %v784, %v1019
        %v1021 = vpop.f32.mrb[0].mxu0
        %v1022 = vadd.f32 %v788, %v1021
        %1023 = vmatprep.mubr.bf16.mxu0 %v724
        %1024 = vmatmul.mubr.bf16.gmra.mrb[0].mxu0 %v723
        %v1025 = vpop.f32.mrb[0].mxu0
        %v1026 = vadd.f32 %v784, %v1025
        %v1027 = vpop.f32.mrb[0].mxu0
        %v1028 = vadd.f32 %v788, %v1027
        %v1029 = vpop.f32.mrb[0].mxu0
        %v1030 = vadd.f32 %v784, %v1029
        %v1031 = vpop.f32.mrb[0].mxu0
        %v1032 = vadd.f32 %v788, %v1031
        %1033 = vmatprep.mubr.bf16.mxu0 %v726
        %1034 = vmatmul.mubr.bf16.gmra.mrb[0].mxu0 %v725
        %v1035 = vpop.f32.mrb[0].mxu0
        %v1036 = vadd.f32 %v784, %v1035
        %v1037 = vpop.f32.mrb[0].mxu0
        %v1038 = vadd.f32 %v788, %v1037
        %v1039 = vpop.f32.mrb[0].mxu0
        %v1040 = vadd.f32 %v784, %v1039
        %v1041 = vpop.f32.mrb[0].mxu0
        %v1042 = vadd.f32 %v788, %v1041
        %1043 = vmatprep.mubr.bf16.mxu0 %v728
        %1044 = vmatmul.mubr.bf16.gmra.mrb[0].mxu0 %v727
        %v1045 = vpop.f32.mrb[0].mxu0
        %v1046 = vadd.f32 %v784, %v1045
        %v1047 = vpop.f32.mrb[0].mxu0
        %v1048 = vadd.f32 %v788, %v1047
        %v1049 = vpop.f32.mrb[0].mxu0
        %v1050 = vadd.f32 %v784, %v1049
        %v1051 = vpop.f32.mrb[0].mxu0
        %v1052 = vadd.f32 %v788, %v1051
        %1053 = vmatprep.mubr.bf16.mxu0 %v730
        %1054 = vmatmul.mubr.bf16.gmra.mrb[0].mxu0 %v729
        %v1055 = vpop.f32.mrb[0].mxu0
        %v1056 = vadd.f32 %v784, %v1055
        %v1057 = vpop.f32.mrb[0].mxu0
        %v1058 = vadd.f32 %v788, %v1057
        %v1059 = vpop.f32.mrb[0].mxu0
        %v1060 = vadd.f32 %v784, %v1059
        %v1061 = vpop.f32.mrb[0].mxu0
        %v1062 = vadd.f32 %v788, %v1061
        %1063 = vmatprep.mubr.bf16.mxu0 %v732
        %1064 = vmatmul.mubr.bf16.gmra.mrb[0].mxu0 %v731
        %v1065 = vpop.f32.mrb[0].mxu0
        %v1066 = vadd.f32 %v784, %v1065
        %v1067 = vpop.f32.mrb[0].mxu0
        %v1068 = vadd.f32 %v788, %v1067
        %v1069 = vpop.f32.mrb[0].mxu0
        %v1070 = vadd.f32 %v784, %v1069
        %v1071 = vpop.f32.mrb[0].mxu0
        %v1072 = vadd.f32 %v788, %v1071
        %1073 = vmatprep.mubr.bf16.mxu0 %v734
        %1074 = vmatmul.mubr.bf16.gmra.mrb[0].mxu0 %v733
        %v1075 = vpop.f32.mrb[0].mxu0
        %v1076 = vadd.f32 %v784, %v1075
        %v1077 = vpop.f32.mrb[0].mxu0
        %v1078 = vadd.f32 %v788, %v1077
        %v1079 = vpop.f32.mrb[0].mxu0
        %v1080 = vadd.f32 %v784, %v1079
        %v1081 = vpop.f32.mrb[0].mxu0
        %v1082 = vadd.f32 %v788, %v1081
        %1083 = vmatprep.mubr.bf16.mxu0 %v736
        %1084 = vmatmul.mubr.bf16.gmra.mrb[0].mxu0 %v735
        %v1085 = vpop.f32.mrb[0].mxu0
        %v1086 = vadd.f32 %v784, %v1085
        %v1087 = vpop.f32.mrb[0].mxu0
        %v1088 = vadd.f32 %v788, %v1087
        %v1089 = vpop.f32.mrb[0].mxu0
        %v1090 = vadd.f32 %v784, %v1089
        %v1091 = vpop.f32.mrb[0].mxu0
        %v1092 = vadd.f32 %v788, %v1091
        %1093 = vmatprep.mubr.bf16.mxu0 %v738
        %1094 = vmatmul.mubr.bf16.gmra.mrb[0].mxu0 %v737
        %v1095 = vpop.f32.mrb[0].mxu0
        %v1096 = vadd.f32 %v784, %v1095
        %v1097 = vpop.f32.mrb[0].mxu0
        %v1098 = vadd.f32 %v788, %v1097
        %v1099 = vpop.f32.mrb[0].mxu0
        %v1100 = vadd.f32 %v784, %v1099
        %v1101 = vpop.f32.mrb[0].mxu0
        %v1102 = vadd.f32 %v788, %v1101
        %1103 = vmatprep.mubr.bf16.mxu0 %v740
        %1104 = vmatmul.mubr.bf16.gmra.mrb[0].mxu0 %v739
        %v1105 = vpop.f32.mrb[0].mxu0
        %v1106 = vadd.f32 %v784, %v1105
        %v1107 = vpop.f32.mrb[0].mxu0
        %v1108 = vadd.f32 %v788, %v1107
        %v1109 = vpop.f32.mrb[0].mxu0
        %v1110 = vadd.f32 %v784, %v1109
        %v1111 = vpop.f32.mrb[0].mxu0
        %v1112 = vadd.f32 %v788, %v1111
        %1113 = vmatprep.mubr.bf16.mxu0 %v742
        %1114 = vmatmul.mubr.bf16.gmra.mrb[0].mxu0 %v741
        %v1115 = vpop.f32.mrb[0].mxu0
        %v1116 = vadd.f32 %v784, %v1115
        %v1117 = vpop.f32.mrb[0].mxu0
        %v1118 = vadd.f32 %v788, %v1117
        %v1119 = vpop.f32.mrb[0].mxu0
        %v1120 = vadd.f32 %v784, %v1119
        %v1121 = vpop.f32.mrb[0].mxu0
        %v1122 = vadd.f32 %v788, %v1121
        %1123 = vmatprep.mubr.bf16.mxu0 %v744
        %1124 = vmatmul.mubr.bf16.gmra.mrb[0].mxu0 %v743
        %v1125 = vpop.f32.mrb[0].mxu0
        %v1126 = vadd.f32 %v784, %v1125
        %v1127 = vpop.f32.mrb[0].mxu0
        %v1128 = vadd.f32 %v788, %v1127
        %v1129 = vpop.f32.mrb[0].mxu0
        %v1130 = vadd.f32 %v784, %v1129
        %v1131 = vpop.f32.mrb[0].mxu0
        %v1132 = vadd.f32 %v788, %v1131
        %1133 = vmatprep.mubr.bf16.mxu0 %v746
        %1134 = vmatmul.mubr.bf16.gmra.mrb[0].mxu0 %v745
        %v1135 = vpop.f32.mrb[0].mxu0
        %v1136 = vadd.f32 %v784, %v1135
        %v1137 = vpop.f32.mrb[0].mxu0
        %v1138 = vadd.f32 %v788, %v1137
        %v1139 = vpop.f32.mrb[0].mxu0
        %v1140 = vadd.f32 %v784, %v1139
        %v1141 = vpop.f32.mrb[0].mxu0
        %v1142 = vadd.f32 %v788, %v1141
        %1143 = vdwg.mxu0
        %v1144 = vmax.f32 %v986, 0.0
        %v1145 = vmax.f32 %v988, 0.0
        %v1146 = vmax.f32 %v990, 0.0
        %v1147 = vmax.f32 %v992, 0.0
        %v1148 = vmax.f32 %v996, 0.0
        %v1149 = vmax.f32 %v998, 0.0
        %v1150 = vmax.f32 %v1000, 0.0
        %v1151 = vmax.f32 %v1002, 0.0
        %v1152 = vmax.f32 %v1006, 0.0
        %v1153 = vmax.f32 %v1008, 0.0
        %v1154 = vmax.f32 %v1010, 0.0
        %v1155 = vmax.f32 %v1012, 0.0
        %v1156 = vmax.f32 %v1016, 0.0
        %v1157 = vmax.f32 %v1018, 0.0
        %v1158 = vmax.f32 %v1020, 0.0
        %v1159 = vmax.f32 %v1022, 0.0
        %v1160 = vmax.f32 %v1026, 0.0
        %v1161 = vmax.f32 %v1028, 0.0
        %v1162 = vmax.f32 %v1030, 0.0
        %v1163 = vmax.f32 %v1032, 0.0
        %v1164 = vmax.f32 %v1036, 0.0
        %v1165 = vmax.f32 %v1038, 0.0
        %v1166 = vmax.f32 %v1040, 0.0
        %v1167 = vmax.f32 %v1042, 0.0
        %v1168 = vmax.f32 %v1046, 0.0
        %v1169 = vmax.f32 %v1048, 0.0
        %v1170 = vmax.f32 %v1050, 0.0
        %v1171 = vmax.f32 %v1052, 0.0
        %v1172 = vmax.f32 %v1056, 0.0
        %v1173 = vmax.f32 %v1058, 0.0
        %v1174 = vmax.f32 %v1060, 0.0
        %v1175 = vmax.f32 %v1062, 0.0
        %v1176 = vmax.f32 %v1066, 0.0
        %v1177 = vmax.f32 %v1068, 0.0
        %v1178 = vmax.f32 %v1070, 0.0
        %v1179 = vmax.f32 %v1072, 0.0
        %v1180 = vmax.f32 %v1076, 0.0
        %v1181 = vmax.f32 %v1078, 0.0
        %v1182 = vmax.f32 %v1080, 0.0
        %v1183 = vmax.f32 %v1082, 0.0
        %v1184 = vmax.f32 %v1086, 0.0
        %v1185 = vmax.f32 %v1088, 0.0
        %v1186 = vmax.f32 %v1090, 0.0
        %v1187 = vmax.f32 %v1092, 0.0
        %v1188 = vmax.f32 %v1096, 0.0
        %v1189 = vmax.f32 %v1098, 0.0
        %v1190 = vmax.f32 %v1100, 0.0
        %v1191 = vmax.f32 %v1102, 0.0
        %v1192 = vmax.f32 %v1106, 0.0
        %v1193 = vmax.f32 %v1108, 0.0
        %v1194 = vmax.f32 %v1110, 0.0
        %v1195 = vmax.f32 %v1112, 0.0
        %v1196 = vmax.f32 %v1116, 0.0
        %v1197 = vmax.f32 %v1118, 0.0
        %v1198 = vmax.f32 %v1120, 0.0
        %v1199 = vmax.f32 %v1122, 0.0
        %v1200 = vmax.f32 %v1126, 0.0
        %v1201 = vmax.f32 %v1128, 0.0
        %v1202 = vmax.f32 %v1130, 0.0
        %v1203 = vmax.f32 %v1132, 0.0
        %v1204 = vmax.f32 %v1136, 0.0
        %v1205 = vmax.f32 %v1138, 0.0
        %v1206 = vmax.f32 %v1140, 0.0
        %v1207 = vmax.f32 %v1142, 0.0
        %v1208 = vunpack.c.l.bf16 %v715
        %v1209 = vunpack.c.l.bf16 %v716
        %v1210 = vunpack.c.h.bf16 %v715
        %v1211 = vunpack.c.h.bf16 %v716
        %v1212 = vunpack.c.l.bf16 %v717
        %v1213 = vunpack.c.l.bf16 %v718
        %v1214 = vunpack.c.h.bf16 %v717
        %v1215 = vunpack.c.h.bf16 %v718
        %v1216 = vunpack.c.l.bf16 %v719
        %v1217 = vunpack.c.l.bf16 %v720
        %v1218 = vunpack.c.h.bf16 %v719
        %v1219 = vunpack.c.h.bf16 %v720
        %v1220 = vunpack.c.l.bf16 %v721
        %v1221 = vunpack.c.l.bf16 %v722
        %v1222 = vunpack.c.h.bf16 %v721
        %v1223 = vunpack.c.h.bf16 %v722
        %v1224 = vunpack.c.l.bf16 %v723
        %v1225 = vunpack.c.l.bf16 %v724
        %v1226 = vunpack.c.h.bf16 %v723
        %v1227 = vunpack.c.h.bf16 %v724
        %v1228 = vunpack.c.l.bf16 %v725
        %v1229 = vunpack.c.l.bf16 %v726
        %v1230 = vunpack.c.h.bf16 %v725
        %v1231 = vunpack.c.h.bf16 %v726
        %v1232 = vunpack.c.l.bf16 %v727
        %v1233 = vunpack.c.l.bf16 %v728
        %v1234 = vunpack.c.h.bf16 %v727
        %v1235 = vunpack.c.h.bf16 %v728
        %v1236 = vunpack.c.l.bf16 %v729
        %v1237 = vunpack.c.l.bf16 %v730
        %v1238 = vunpack.c.h.bf16 %v729
        %v1239 = vunpack.c.h.bf16 %v730
        %v1240 = vunpack.c.l.bf16 %v731
        %v1241 = vunpack.c.l.bf16 %v732
        %v1242 = vunpack.c.h.bf16 %v731
        %v1243 = vunpack.c.h.bf16 %v732
        %v1244 = vunpack.c.l.bf16 %v733
        %v1245 = vunpack.c.l.bf16 %v734
        %v1246 = vunpack.c.h.bf16 %v733
        %v1247 = vunpack.c.h.bf16 %v734
        %v1248 = vunpack.c.l.bf16 %v735
        %v1249 = vunpack.c.l.bf16 %v736
        %v1250 = vunpack.c.h.bf16 %v735
        %v1251 = vunpack.c.h.bf16 %v736
        %v1252 = vunpack.c.l.bf16 %v737
        %v1253 = vunpack.c.l.bf16 %v738
        %v1254 = vunpack.c.h.bf16 %v737
        %v1255 = vunpack.c.h.bf16 %v738
        %v1256 = vunpack.c.l.bf16 %v739
        %v1257 = vunpack.c.l.bf16 %v740
        %v1258 = vunpack.c.h.bf16 %v739
        %v1259 = vunpack.c.h.bf16 %v740
        %v1260 = vunpack.c.l.bf16 %v741
        %v1261 = vunpack.c.l.bf16 %v742
        %v1262 = vunpack.c.h.bf16 %v741
        %v1263 = vunpack.c.h.bf16 %v742
        %v1264 = vunpack.c.l.bf16 %v743
        %v1265 = vunpack.c.l.bf16 %v744
        %v1266 = vunpack.c.h.bf16 %v743
        %v1267 = vunpack.c.h.bf16 %v744
        %v1268 = vunpack.c.l.bf16 %v745
        %v1269 = vunpack.c.l.bf16 %v746
        %v1270 = vunpack.c.h.bf16 %v745
        %v1271 = vunpack.c.h.bf16 %v746
        %v1272 = vadd.f32 %v1144, %v1208
        %v1273 = vadd.f32 %v1145, %v1209
        %v1274 = vadd.f32 %v1146, %v1210
        %v1275 = vadd.f32 %v1147, %v1211
        %v1276 = vadd.f32 %v1148, %v1212
        %v1277 = vadd.f32 %v1149, %v1213
        %v1278 = vadd.f32 %v1150, %v1214
        %v1279 = vadd.f32 %v1151, %v1215
        %v1280 = vadd.f32 %v1152, %v1216
        %v1281 = vadd.f32 %v1153, %v1217
        %v1282 = vadd.f32 %v1154, %v1218
        %v1283 = vadd.f32 %v1155, %v1219
        %v1284 = vadd.f32 %v1156, %v1220
        %v1285 = vadd.f32 %v1157, %v1221
        %v1286 = vadd.f32 %v1158, %v1222
        %v1287 = vadd.f32 %v1159, %v1223
        %v1288 = vadd.f32 %v1160, %v1224
        %v1289 = vadd.f32 %v1161, %v1225
        %v1290 = vadd.f32 %v1162, %v1226
        %v1291 = vadd.f32 %v1163, %v1227
        %v1292 = vadd.f32 %v1164, %v1228
        %v1293 = vadd.f32 %v1165, %v1229
        %v1294 = vadd.f32 %v1166, %v1230
        %v1295 = vadd.f32 %v1167, %v1231
        %v1296 = vadd.f32 %v1168, %v1232
        %v1297 = vadd.f32 %v1169, %v1233
        %v1298 = vadd.f32 %v1170, %v1234
        %v1299 = vadd.f32 %v1171, %v1235
        %v1300 = vadd.f32 %v1172, %v1236
        %v1301 = vadd.f32 %v1173, %v1237
        %v1302 = vadd.f32 %v1174, %v1238
        %v1303 = vadd.f32 %v1175, %v1239
        %v1304 = vadd.f32 %v1176, %v1240
        %v1305 = vadd.f32 %v1177, %v1241
        %v1306 = vadd.f32 %v1178, %v1242
        %v1307 = vadd.f32 %v1179, %v1243
        %v1308 = vadd.f32 %v1180, %v1244
        %v1309 = vadd.f32 %v1181, %v1245
        %v1310 = vadd.f32 %v1182, %v1246
        %v1311 = vadd.f32 %v1183, %v1247
        %v1312 = vadd.f32 %v1184, %v1248
        %v1313 = vadd.f32 %v1185, %v1249
        %v1314 = vadd.f32 %v1186, %v1250
        %v1315 = vadd.f32 %v1187, %v1251
        %v1316 = vadd.f32 %v1188, %v1252
        %v1317 = vadd.f32 %v1189, %v1253
        %v1318 = vadd.f32 %v1190, %v1254
        %v1319 = vadd.f32 %v1191, %v1255
        %v1320 = vadd.f32 %v1192, %v1256
        %v1321 = vadd.f32 %v1193, %v1257
        %v1322 = vadd.f32 %v1194, %v1258
        %v1323 = vadd.f32 %v1195, %v1259
        %v1324 = vadd.f32 %v1196, %v1260
        %v1325 = vadd.f32 %v1197, %v1261
        %v1326 = vadd.f32 %v1198, %v1262
        %v1327 = vadd.f32 %v1199, %v1263
        %v1328 = vadd.f32 %v1200, %v1264
        %v1329 = vadd.f32 %v1201, %v1265
        %v1330 = vadd.f32 %v1202, %v1266
        %v1331 = vadd.f32 %v1203, %v1267
        %v1332 = vadd.f32 %v1204, %v1268
        %v1333 = vadd.f32 %v1205, %v1269
        %v1334 = vadd.f32 %v1206, %v1270
        %v1335 = vadd.f32 %v1207, %v1271
        %v1336 = vpack.c.bf16 %v1274, %v1272
        %v1337 = vpack.c.bf16 %v1275, %v1273
        %v1338 = vpack.c.bf16 %v1278, %v1276
        %v1339 = vpack.c.bf16 %v1279, %v1277
        %v1340 = vpack.c.bf16 %v1282, %v1280
        %v1341 = vpack.c.bf16 %v1283, %v1281
        %v1342 = vpack.c.bf16 %v1286, %v1284
        %v1343 = vpack.c.bf16 %v1287, %v1285
        %v1344 = vpack.c.bf16 %v1290, %v1288
        %v1345 = vpack.c.bf16 %v1291, %v1289
        %v1346 = vpack.c.bf16 %v1294, %v1292
        %v1347 = vpack.c.bf16 %v1295, %v1293
        %v1348 = vpack.c.bf16 %v1298, %v1296
        %v1349 = vpack.c.bf16 %v1299, %v1297
        %v1350 = vpack.c.bf16 %v1302, %v1300
        %v1351 = vpack.c.bf16 %v1303, %v1301
        %v1352 = vpack.c.bf16 %v1306, %v1304
        %v1353 = vpack.c.bf16 %v1307, %v1305
        %v1354 = vpack.c.bf16 %v1310, %v1308
        %v1355 = vpack.c.bf16 %v1311, %v1309
        %v1356 = vpack.c.bf16 %v1314, %v1312
        %v1357 = vpack.c.bf16 %v1315, %v1313
        %v1358 = vpack.c.bf16 %v1318, %v1316
        %v1359 = vpack.c.bf16 %v1319, %v1317
        %v1360 = vpack.c.bf16 %v1322, %v1320
        %v1361 = vpack.c.bf16 %v1323, %v1321
        %v1362 = vpack.c.bf16 %v1326, %v1324
        %v1363 = vpack.c.bf16 %v1327, %v1325
        %v1364 = vpack.c.bf16 %v1330, %v1328
        %v1365 = vpack.c.bf16 %v1331, %v1329
        %v1366 = vpack.c.bf16 %v1334, %v1332
        %v1367 = vpack.c.bf16 %v1335, %v1333
        %v1368 = vld [vmem:[%s5] sm:$0xff]
        %v1369 = vld [vmem:[%s5 + $0x8] sm:$0xff]
        %v1370 = vld [vmem:[%s5 + $0x10] sm:$0xff]
        %v1371 = vld [vmem:[%s5 + $0x18] sm:$0xff]
        %v1372 = vld [vmem:[%s5 + $0x20] sm:$0xff]
        %v1373 = vld [vmem:[%s5 + $0x28] sm:$0xff]
        %v1374 = vld [vmem:[%s5 + $0x30] sm:$0xff]
        %v1375 = vld [vmem:[%s5 + $0x38] sm:$0xff]
        %v1376 = vld [vmem:[%s5 + $0x40] sm:$0xff]
        %v1377 = vld [vmem:[%s5 + $0x48] sm:$0xff]
        %v1378 = vld [vmem:[%s5 + $0x50] sm:$0xff]
        %v1379 = vld [vmem:[%s5 + $0x58] sm:$0xff]
        %v1380 = vld [vmem:[%s5 + $0x60] sm:$0xff]
        %v1381 = vld [vmem:[%s5 + $0x68] sm:$0xff]
        %v1382 = vld [vmem:[%s5 + $0x70] sm:$0xff]
        %v1383 = vld [vmem:[%s5 + $0x78] sm:$0xff]
        %v1384 = vld [vmem:[%s5 + $0x80] sm:$0xff]
        %v1385 = vld [vmem:[%s5 + $0x88] sm:$0xff]
        %v1386 = vld [vmem:[%s5 + $0x90] sm:$0xff]
        %v1387 = vld [vmem:[%s5 + $0x98] sm:$0xff]
        %v1388 = vld [vmem:[%s5 + $0xa0] sm:$0xff]
        %v1389 = vld [vmem:[%s5 + $0xa8] sm:$0xff]
        %v1390 = vld [vmem:[%s5 + $0xb0] sm:$0xff]
        %v1391 = vld [vmem:[%s5 + $0xb8] sm:$0xff]
        %v1392 = vld [vmem:[%s5 + $0xc0] sm:$0xff]
        %v1393 = vld [vmem:[%s5 + $0xc8] sm:$0xff]
        %v1394 = vld [vmem:[%s5 + $0xd0] sm:$0xff]
        %v1395 = vld [vmem:[%s5 + $0xd8] sm:$0xff]
        %v1396 = vld [vmem:[%s5 + $0xe0] sm:$0xff]
        %v1397 = vld [vmem:[%s5 + $0xe8] sm:$0xff]
        %v1398 = vld [vmem:[%s5 + $0xf0] sm:$0xff]
        %v1399 = vld [vmem:[%s5 + $0xf8] sm:$0xff]
        %v1400 = vld [vmem:[%s6] sm:$0x3]
        %v1402 = vlaneseq
        %v1403 = vshrl.u32 %v1402, 7
        %v1404 = vsub.s32 0, %v1403
        %v1405 = vrot.slane %v1400, %v1404
        %v1406 = vlaneseq
        %v1407 = vshrl.u32 %v1406, 7
        %v1408 = vsub.s32 1, %v1407
        %v1409 = vrot.slane %v1400, %v1408
        %v1444 = vunpack.c.l.b16 %v1368
        %v1445 = vunpack.c.h.b16 %v1368
        %v1446 = vunpack.c.l.b16 %v1369
        %v1447 = vunpack.c.h.b16 %v1369
        %v1448 = vunpack.c.l.b16 %v1370
        %v1449 = vunpack.c.h.b16 %v1370
        %v1450 = vunpack.c.l.b16 %v1371
        %v1451 = vunpack.c.h.b16 %v1371
        %v1452 = vunpack.c.l.b16 %v1372
        %v1453 = vunpack.c.h.b16 %v1372
        %v1454 = vunpack.c.l.b16 %v1373
        %v1455 = vunpack.c.h.b16 %v1373
        %v1456 = vunpack.c.l.b16 %v1374
        %v1457 = vunpack.c.h.b16 %v1374
        %v1458 = vunpack.c.l.b16 %v1375
        %v1459 = vunpack.c.h.b16 %v1375
        %v1460 = vunpack.c.l.b16 %v1376
        %v1461 = vunpack.c.h.b16 %v1376
        %v1462 = vunpack.c.l.b16 %v1377
        %v1463 = vunpack.c.h.b16 %v1377
        %v1464 = vunpack.c.l.b16 %v1378
        %v1465 = vunpack.c.h.b16 %v1378
        %v1466 = vunpack.c.l.b16 %v1379
        %v1467 = vunpack.c.h.b16 %v1379
        %v1468 = vunpack.c.l.b16 %v1380
        %v1469 = vunpack.c.h.b16 %v1380
        %v1470 = vunpack.c.l.b16 %v1381
        %v1471 = vunpack.c.h.b16 %v1381
        %v1472 = vunpack.c.l.b16 %v1382
        %v1473 = vunpack.c.h.b16 %v1382
        %v1474 = vunpack.c.l.b16 %v1383
        %v1475 = vunpack.c.h.b16 %v1383
        %v1476 = vunpack.c.l.b16 %v1384
        %v1477 = vunpack.c.h.b16 %v1384
        %v1478 = vunpack.c.l.b16 %v1385
        %v1479 = vunpack.c.h.b16 %v1385
        %v1480 = vunpack.c.l.b16 %v1386
        %v1481 = vunpack.c.h.b16 %v1386
        %v1482 = vunpack.c.l.b16 %v1387
        %v1483 = vunpack.c.h.b16 %v1387
        %v1484 = vunpack.c.l.b16 %v1388
        %v1485 = vunpack.c.h.b16 %v1388
        %v1486 = vunpack.c.l.b16 %v1389
        %v1487 = vunpack.c.h.b16 %v1389
        %v1488 = vunpack.c.l.b16 %v1390
        %v1489 = vunpack.c.h.b16 %v1390
        %v1490 = vunpack.c.l.b16 %v1391
        %v1491 = vunpack.c.h.b16 %v1391
        %v1492 = vunpack.c.l.b16 %v1392
        %v1493 = vunpack.c.h.b16 %v1392
        %v1494 = vunpack.c.l.b16 %v1393
        %v1495 = vunpack.c.h.b16 %v1393
        %v1496 = vunpack.c.l.b16 %v1394
        %v1497 = vunpack.c.h.b16 %v1394
        %v1498 = vunpack.c.l.b16 %v1395
        %v1499 = vunpack.c.h.b16 %v1395
        %v1500 = vunpack.c.l.b16 %v1396
        %v1501 = vunpack.c.h.b16 %v1396
        %v1502 = vunpack.c.l.b16 %v1397
        %v1503 = vunpack.c.h.b16 %v1397
        %v1504 = vunpack.c.l.b16 %v1398
        %v1505 = vunpack.c.h.b16 %v1398
        %v1506 = vunpack.c.l.b16 %v1399
        %v1507 = vunpack.c.h.b16 %v1399
        %v1508 = vpack.c.b16 %v1446, %v1444
        %v1509 = vpack.c.b16 %v1447, %v1445
        %v1510 = vpack.c.b16 %v1450, %v1448
        %v1511 = vpack.c.b16 %v1451, %v1449
        %v1512 = vpack.c.b16 %v1454, %v1452
        %v1513 = vpack.c.b16 %v1455, %v1453
        %v1514 = vpack.c.b16 %v1458, %v1456
        %v1515 = vpack.c.b16 %v1459, %v1457
        %v1516 = vpack.c.b16 %v1462, %v1460
        %v1517 = vpack.c.b16 %v1463, %v1461
        %v1518 = vpack.c.b16 %v1466, %v1464
        %v1519 = vpack.c.b16 %v1467, %v1465
        %v1520 = vpack.c.b16 %v1470, %v1468
        %v1521 = vpack.c.b16 %v1471, %v1469
        %v1522 = vpack.c.b16 %v1474, %v1472
        %v1523 = vpack.c.b16 %v1475, %v1473
        %v1524 = vpack.c.b16 %v1478, %v1476
        %v1525 = vpack.c.b16 %v1479, %v1477
        %v1526 = vpack.c.b16 %v1482, %v1480
        %v1527 = vpack.c.b16 %v1483, %v1481
        %v1528 = vpack.c.b16 %v1486, %v1484
        %v1529 = vpack.c.b16 %v1487, %v1485
        %v1530 = vpack.c.b16 %v1490, %v1488
        %v1531 = vpack.c.b16 %v1491, %v1489
        %v1532 = vpack.c.b16 %v1494, %v1492
        %v1533 = vpack.c.b16 %v1495, %v1493
        %v1534 = vpack.c.b16 %v1498, %v1496
        %v1535 = vpack.c.b16 %v1499, %v1497
        %v1536 = vpack.c.b16 %v1502, %v1500
        %v1537 = vpack.c.b16 %v1503, %v1501
        %v1538 = vpack.c.b16 %v1506, %v1504
        %v1539 = vpack.c.b16 %v1507, %v1505
        %1572 = vmatprep.subr.bf16.mxu0 %v1509
        %1573 = vmatpush1.bf16.msra.mxu0 %v1508
        %1574 = vmatprep.subr.bf16.mxu0 %v1511
        %1575 = vmatpush1.bf16.msra.mxu0 %v1510
        %1576 = vmatprep.subr.bf16.mxu0 %v1513
        %1577 = vmatpush1.bf16.msra.mxu0 %v1512
        %1578 = vmatprep.subr.bf16.mxu0 %v1515
        %1579 = vmatpush1.bf16.msra.mxu0 %v1514
        %1580 = vmatprep.subr.bf16.mxu0 %v1517
        %1581 = vmatpush1.bf16.msra.mxu0 %v1516
        %1582 = vmatprep.subr.bf16.mxu0 %v1519
        %1583 = vmatpush1.bf16.msra.mxu0 %v1518
        %1584 = vmatprep.subr.bf16.mxu0 %v1521
        %1585 = vmatpush1.bf16.msra.mxu0 %v1520
        %1586 = vmatprep.subr.bf16.mxu0 %v1523
        %1587 = vmatpush1.bf16.msra.mxu0 %v1522
        %1588 = vmatprep.subr.bf16.mxu0 %v1525
        %1589 = vmatpush1.bf16.msra.mxu0 %v1524
        %1590 = vmatprep.subr.bf16.mxu0 %v1527
        %1591 = vmatpush1.bf16.msra.mxu0 %v1526
        %1592 = vmatprep.subr.bf16.mxu0 %v1529
        %1593 = vmatpush1.bf16.msra.mxu0 %v1528
        %1594 = vmatprep.subr.bf16.mxu0 %v1531
        %1595 = vmatpush1.bf16.msra.mxu0 %v1530
        %1596 = vmatprep.subr.bf16.mxu0 %v1533
        %1597 = vmatpush1.bf16.msra.mxu0 %v1532
        %1598 = vmatprep.subr.bf16.mxu0 %v1535
        %1599 = vmatpush1.bf16.msra.mxu0 %v1534
        %1600 = vmatprep.subr.bf16.mxu0 %v1537
        %1601 = vmatpush1.bf16.msra.mxu0 %v1536
        %1602 = vmatprep.subr.bf16.mxu0 %v1539
        %1603 = vmatpush1.bf16.msra.mxu0 %v1538
        %1604 = vmatprep.mubr.bf16.mxu0 %v1337
        %1605 = vmatmul.mubr.bf16.gmra.mrb[0].mxu0 %v1336
        %v1606 = vpop.f32.mrb[0].mxu0
        %v1607 = vadd.f32 %v1405, %v1606
        %v1608 = vpop.f32.mrb[0].mxu0
        %v1609 = vadd.f32 %v1409, %v1608
        %v1610 = vpop.f32.mrb[0].mxu0
        %v1611 = vadd.f32 %v1405, %v1610
        %v1612 = vpop.f32.mrb[0].mxu0
        %v1613 = vadd.f32 %v1409, %v1612
        %1614 = vmatprep.mubr.bf16.mxu0 %v1339
        %1615 = vmatmul.mubr.bf16.gmra.mrb[0].mxu0 %v1338
        %v1616 = vpop.f32.mrb[0].mxu0
        %v1617 = vadd.f32 %v1405, %v1616
        %v1618 = vpop.f32.mrb[0].mxu0
        %v1619 = vadd.f32 %v1409, %v1618
        %v1620 = vpop.f32.mrb[0].mxu0
        %v1621 = vadd.f32 %v1405, %v1620
        %v1622 = vpop.f32.mrb[0].mxu0
        %v1623 = vadd.f32 %v1409, %v1622
        %1624 = vmatprep.mubr.bf16.mxu0 %v1341
        %1625 = vmatmul.mubr.bf16.gmra.mrb[0].mxu0 %v1340
        %v1626 = vpop.f32.mrb[0].mxu0
        %v1627 = vadd.f32 %v1405, %v1626
        %v1628 = vpop.f32.mrb[0].mxu0
        %v1629 = vadd.f32 %v1409, %v1628
        %v1630 = vpop.f32.mrb[0].mxu0
        %v1631 = vadd.f32 %v1405, %v1630
        %v1632 = vpop.f32.mrb[0].mxu0
        %v1633 = vadd.f32 %v1409, %v1632
        %1634 = vmatprep.mubr.bf16.mxu0 %v1343
        %1635 = vmatmul.mubr.bf16.gmra.mrb[0].mxu0 %v1342
        %v1636 = vpop.f32.mrb[0].mxu0
        %v1637 = vadd.f32 %v1405, %v1636
        %v1638 = vpop.f32.mrb[0].mxu0
        %v1639 = vadd.f32 %v1409, %v1638
        %v1640 = vpop.f32.mrb[0].mxu0
        %v1641 = vadd.f32 %v1405, %v1640
        %v1642 = vpop.f32.mrb[0].mxu0
        %v1643 = vadd.f32 %v1409, %v1642
        %1644 = vmatprep.mubr.bf16.mxu0 %v1345
        %1645 = vmatmul.mubr.bf16.gmra.mrb[0].mxu0 %v1344
        %v1646 = vpop.f32.mrb[0].mxu0
        %v1647 = vadd.f32 %v1405, %v1646
        %v1648 = vpop.f32.mrb[0].mxu0
        %v1649 = vadd.f32 %v1409, %v1648
        %v1650 = vpop.f32.mrb[0].mxu0
        %v1651 = vadd.f32 %v1405, %v1650
        %v1652 = vpop.f32.mrb[0].mxu0
        %v1653 = vadd.f32 %v1409, %v1652
        %1654 = vmatprep.mubr.bf16.mxu0 %v1347
        %1655 = vmatmul.mubr.bf16.gmra.mrb[0].mxu0 %v1346
        %v1656 = vpop.f32.mrb[0].mxu0
        %v1657 = vadd.f32 %v1405, %v1656
        %v1658 = vpop.f32.mrb[0].mxu0
        %v1659 = vadd.f32 %v1409, %v1658
        %v1660 = vpop.f32.mrb[0].mxu0
        %v1661 = vadd.f32 %v1405, %v1660
        %v1662 = vpop.f32.mrb[0].mxu0
        %v1663 = vadd.f32 %v1409, %v1662
        %1664 = vmatprep.mubr.bf16.mxu0 %v1349
        %1665 = vmatmul.mubr.bf16.gmra.mrb[0].mxu0 %v1348
        %v1666 = vpop.f32.mrb[0].mxu0
        %v1667 = vadd.f32 %v1405, %v1666
        %v1668 = vpop.f32.mrb[0].mxu0
        %v1669 = vadd.f32 %v1409, %v1668
        %v1670 = vpop.f32.mrb[0].mxu0
        %v1671 = vadd.f32 %v1405, %v1670
        %v1672 = vpop.f32.mrb[0].mxu0
        %v1673 = vadd.f32 %v1409, %v1672
        %1674 = vmatprep.mubr.bf16.mxu0 %v1351
        %1675 = vmatmul.mubr.bf16.gmra.mrb[0].mxu0 %v1350
        %v1676 = vpop.f32.mrb[0].mxu0
        %v1677 = vadd.f32 %v1405, %v1676
        %v1678 = vpop.f32.mrb[0].mxu0
        %v1679 = vadd.f32 %v1409, %v1678
        %v1680 = vpop.f32.mrb[0].mxu0
        %v1681 = vadd.f32 %v1405, %v1680
        %v1682 = vpop.f32.mrb[0].mxu0
        %v1683 = vadd.f32 %v1409, %v1682
        %1684 = vmatprep.mubr.bf16.mxu0 %v1353
        %1685 = vmatmul.mubr.bf16.gmra.mrb[0].mxu0 %v1352
        %v1686 = vpop.f32.mrb[0].mxu0
        %v1687 = vadd.f32 %v1405, %v1686
        %v1688 = vpop.f32.mrb[0].mxu0
        %v1689 = vadd.f32 %v1409, %v1688
        %v1690 = vpop.f32.mrb[0].mxu0
        %v1691 = vadd.f32 %v1405, %v1690
        %v1692 = vpop.f32.mrb[0].mxu0
        %v1693 = vadd.f32 %v1409, %v1692
        %1694 = vmatprep.mubr.bf16.mxu0 %v1355
        %1695 = vmatmul.mubr.bf16.gmra.mrb[0].mxu0 %v1354
        %v1696 = vpop.f32.mrb[0].mxu0
        %v1697 = vadd.f32 %v1405, %v1696
        %v1698 = vpop.f32.mrb[0].mxu0
        %v1699 = vadd.f32 %v1409, %v1698
        %v1700 = vpop.f32.mrb[0].mxu0
        %v1701 = vadd.f32 %v1405, %v1700
        %v1702 = vpop.f32.mrb[0].mxu0
        %v1703 = vadd.f32 %v1409, %v1702
        %1704 = vmatprep.mubr.bf16.mxu0 %v1357
        %1705 = vmatmul.mubr.bf16.gmra.mrb[0].mxu0 %v1356
        %v1706 = vpop.f32.mrb[0].mxu0
        %v1707 = vadd.f32 %v1405, %v1706
        %v1708 = vpop.f32.mrb[0].mxu0
        %v1709 = vadd.f32 %v1409, %v1708
        %v1710 = vpop.f32.mrb[0].mxu0
        %v1711 = vadd.f32 %v1405, %v1710
        %v1712 = vpop.f32.mrb[0].mxu0
        %v1713 = vadd.f32 %v1409, %v1712
        %1714 = vmatprep.mubr.bf16.mxu0 %v1359
        %1715 = vmatmul.mubr.bf16.gmra.mrb[0].mxu0 %v1358
        %v1716 = vpop.f32.mrb[0].mxu0
        %v1717 = vadd.f32 %v1405, %v1716
        %v1718 = vpop.f32.mrb[0].mxu0
        %v1719 = vadd.f32 %v1409, %v1718
        %v1720 = vpop.f32.mrb[0].mxu0
        %v1721 = vadd.f32 %v1405, %v1720
        %v1722 = vpop.f32.mrb[0].mxu0
        %v1723 = vadd.f32 %v1409, %v1722
        %1724 = vmatprep.mubr.bf16.mxu0 %v1361
        %1725 = vmatmul.mubr.bf16.gmra.mrb[0].mxu0 %v1360
        %v1726 = vpop.f32.mrb[0].mxu0
        %v1727 = vadd.f32 %v1405, %v1726
        %v1728 = vpop.f32.mrb[0].mxu0
        %v1729 = vadd.f32 %v1409, %v1728
        %v1730 = vpop.f32.mrb[0].mxu0
        %v1731 = vadd.f32 %v1405, %v1730
        %v1732 = vpop.f32.mrb[0].mxu0
        %v1733 = vadd.f32 %v1409, %v1732
        %1734 = vmatprep.mubr.bf16.mxu0 %v1363
        %1735 = vmatmul.mubr.bf16.gmra.mrb[0].mxu0 %v1362
        %v1736 = vpop.f32.mrb[0].mxu0
        %v1737 = vadd.f32 %v1405, %v1736
        %v1738 = vpop.f32.mrb[0].mxu0
        %v1739 = vadd.f32 %v1409, %v1738
        %v1740 = vpop.f32.mrb[0].mxu0
        %v1741 = vadd.f32 %v1405, %v1740
        %v1742 = vpop.f32.mrb[0].mxu0
        %v1743 = vadd.f32 %v1409, %v1742
        %1744 = vmatprep.mubr.bf16.mxu0 %v1365
        %1745 = vmatmul.mubr.bf16.gmra.mrb[0].mxu0 %v1364
        %v1746 = vpop.f32.mrb[0].mxu0
        %v1747 = vadd.f32 %v1405, %v1746
        %v1748 = vpop.f32.mrb[0].mxu0
        %v1749 = vadd.f32 %v1409, %v1748
        %v1750 = vpop.f32.mrb[0].mxu0
        %v1751 = vadd.f32 %v1405, %v1750
        %v1752 = vpop.f32.mrb[0].mxu0
        %v1753 = vadd.f32 %v1409, %v1752
        %1754 = vmatprep.mubr.bf16.mxu0 %v1367
        %1755 = vmatmul.mubr.bf16.gmra.mrb[0].mxu0 %v1366
        %v1756 = vpop.f32.mrb[0].mxu0
        %v1757 = vadd.f32 %v1405, %v1756
        %v1758 = vpop.f32.mrb[0].mxu0
        %v1759 = vadd.f32 %v1409, %v1758
        %v1760 = vpop.f32.mrb[0].mxu0
        %v1761 = vadd.f32 %v1405, %v1760
        %v1762 = vpop.f32.mrb[0].mxu0
        %v1763 = vadd.f32 %v1409, %v1762
        %1764 = vdwg.mxu0
        %v1765 = vmax.f32 %v1607, 0.0
        %v1766 = vmax.f32 %v1609, 0.0
        %v1767 = vmax.f32 %v1611, 0.0
        %v1768 = vmax.f32 %v1613, 0.0
        %v1769 = vmax.f32 %v1617, 0.0
        %v1770 = vmax.f32 %v1619, 0.0
        %v1771 = vmax.f32 %v1621, 0.0
        %v1772 = vmax.f32 %v1623, 0.0
        %v1773 = vmax.f32 %v1627, 0.0
        %v1774 = vmax.f32 %v1629, 0.0
        %v1775 = vmax.f32 %v1631, 0.0
        %v1776 = vmax.f32 %v1633, 0.0
        %v1777 = vmax.f32 %v1637, 0.0
        %v1778 = vmax.f32 %v1639, 0.0
        %v1779 = vmax.f32 %v1641, 0.0
        %v1780 = vmax.f32 %v1643, 0.0
        %v1781 = vmax.f32 %v1647, 0.0
        %v1782 = vmax.f32 %v1649, 0.0
        %v1783 = vmax.f32 %v1651, 0.0
        %v1784 = vmax.f32 %v1653, 0.0
        %v1785 = vmax.f32 %v1657, 0.0
        %v1786 = vmax.f32 %v1659, 0.0
        %v1787 = vmax.f32 %v1661, 0.0
        %v1788 = vmax.f32 %v1663, 0.0
        %v1789 = vmax.f32 %v1667, 0.0
        %v1790 = vmax.f32 %v1669, 0.0
        %v1791 = vmax.f32 %v1671, 0.0
        %v1792 = vmax.f32 %v1673, 0.0
        %v1793 = vmax.f32 %v1677, 0.0
        %v1794 = vmax.f32 %v1679, 0.0
        %v1795 = vmax.f32 %v1681, 0.0
        %v1796 = vmax.f32 %v1683, 0.0
        %v1797 = vmax.f32 %v1687, 0.0
        %v1798 = vmax.f32 %v1689, 0.0
        %v1799 = vmax.f32 %v1691, 0.0
        %v1800 = vmax.f32 %v1693, 0.0
        %v1801 = vmax.f32 %v1697, 0.0
        %v1802 = vmax.f32 %v1699, 0.0
        %v1803 = vmax.f32 %v1701, 0.0
        %v1804 = vmax.f32 %v1703, 0.0
        %v1805 = vmax.f32 %v1707, 0.0
        %v1806 = vmax.f32 %v1709, 0.0
        %v1807 = vmax.f32 %v1711, 0.0
        %v1808 = vmax.f32 %v1713, 0.0
        %v1809 = vmax.f32 %v1717, 0.0
        %v1810 = vmax.f32 %v1719, 0.0
        %v1811 = vmax.f32 %v1721, 0.0
        %v1812 = vmax.f32 %v1723, 0.0
        %v1813 = vmax.f32 %v1727, 0.0
        %v1814 = vmax.f32 %v1729, 0.0
        %v1815 = vmax.f32 %v1731, 0.0
        %v1816 = vmax.f32 %v1733, 0.0
        %v1817 = vmax.f32 %v1737, 0.0
        %v1818 = vmax.f32 %v1739, 0.0
        %v1819 = vmax.f32 %v1741, 0.0
        %v1820 = vmax.f32 %v1743, 0.0
        %v1821 = vmax.f32 %v1747, 0.0
        %v1822 = vmax.f32 %v1749, 0.0
        %v1823 = vmax.f32 %v1751, 0.0
        %v1824 = vmax.f32 %v1753, 0.0
        %v1825 = vmax.f32 %v1757, 0.0
        %v1826 = vmax.f32 %v1759, 0.0
        %v1827 = vmax.f32 %v1761, 0.0
        %v1828 = vmax.f32 %v1763, 0.0
        %v1829 = vunpack.c.l.bf16 %v1336
        %v1830 = vunpack.c.l.bf16 %v1337
        %v1831 = vunpack.c.h.bf16 %v1336
        %v1832 = vunpack.c.h.bf16 %v1337
        %v1833 = vunpack.c.l.bf16 %v1338
        %v1834 = vunpack.c.l.bf16 %v1339
        %v1835 = vunpack.c.h.bf16 %v1338
        %v1836 = vunpack.c.h.bf16 %v1339
        %v1837 = vunpack.c.l.bf16 %v1340
        %v1838 = vunpack.c.l.bf16 %v1341
        %v1839 = vunpack.c.h.bf16 %v1340
        %v1840 = vunpack.c.h.bf16 %v1341
        %v1841 = vunpack.c.l.bf16 %v1342
        %v1842 = vunpack.c.l.bf16 %v1343
        %v1843 = vunpack.c.h.bf16 %v1342
        %v1844 = vunpack.c.h.bf16 %v1343
        %v1845 = vunpack.c.l.bf16 %v1344
        %v1846 = vunpack.c.l.bf16 %v1345
        %v1847 = vunpack.c.h.bf16 %v1344
        %v1848 = vunpack.c.h.bf16 %v1345
        %v1849 = vunpack.c.l.bf16 %v1346
        %v1850 = vunpack.c.l.bf16 %v1347
        %v1851 = vunpack.c.h.bf16 %v1346
        %v1852 = vunpack.c.h.bf16 %v1347
        %v1853 = vunpack.c.l.bf16 %v1348
        %v1854 = vunpack.c.l.bf16 %v1349
        %v1855 = vunpack.c.h.bf16 %v1348
        %v1856 = vunpack.c.h.bf16 %v1349
        %v1857 = vunpack.c.l.bf16 %v1350
        %v1858 = vunpack.c.l.bf16 %v1351
        %v1859 = vunpack.c.h.bf16 %v1350
        %v1860 = vunpack.c.h.bf16 %v1351
        %v1861 = vunpack.c.l.bf16 %v1352
        %v1862 = vunpack.c.l.bf16 %v1353
        %v1863 = vunpack.c.h.bf16 %v1352
        %v1864 = vunpack.c.h.bf16 %v1353
        %v1865 = vunpack.c.l.bf16 %v1354
        %v1866 = vunpack.c.l.bf16 %v1355
        %v1867 = vunpack.c.h.bf16 %v1354
        %v1868 = vunpack.c.h.bf16 %v1355
        %v1869 = vunpack.c.l.bf16 %v1356
        %v1870 = vunpack.c.l.bf16 %v1357
        %v1871 = vunpack.c.h.bf16 %v1356
        %v1872 = vunpack.c.h.bf16 %v1357
        %v1873 = vunpack.c.l.bf16 %v1358
        %v1874 = vunpack.c.l.bf16 %v1359
        %v1875 = vunpack.c.h.bf16 %v1358
        %v1876 = vunpack.c.h.bf16 %v1359
        %v1877 = vunpack.c.l.bf16 %v1360
        %v1878 = vunpack.c.l.bf16 %v1361
        %v1879 = vunpack.c.h.bf16 %v1360
        %v1880 = vunpack.c.h.bf16 %v1361
        %v1881 = vunpack.c.l.bf16 %v1362
        %v1882 = vunpack.c.l.bf16 %v1363
        %v1883 = vunpack.c.h.bf16 %v1362
        %v1884 = vunpack.c.h.bf16 %v1363
        %v1885 = vunpack.c.l.bf16 %v1364
        %v1886 = vunpack.c.l.bf16 %v1365
        %v1887 = vunpack.c.h.bf16 %v1364
        %v1888 = vunpack.c.h.bf16 %v1365
        %v1889 = vunpack.c.l.bf16 %v1366
        %v1890 = vunpack.c.l.bf16 %v1367
        %v1891 = vunpack.c.h.bf16 %v1366
        %v1892 = vunpack.c.h.bf16 %v1367
        %v1893 = vadd.f32 %v1765, %v1829
        %v1894 = vadd.f32 %v1766, %v1830
        %v1895 = vadd.f32 %v1767, %v1831
        %v1896 = vadd.f32 %v1768, %v1832
        %v1897 = vadd.f32 %v1769, %v1833
        %v1898 = vadd.f32 %v1770, %v1834
        %v1899 = vadd.f32 %v1771, %v1835
        %v1900 = vadd.f32 %v1772, %v1836
        %v1901 = vadd.f32 %v1773, %v1837
        %v1902 = vadd.f32 %v1774, %v1838
        %v1903 = vadd.f32 %v1775, %v1839
        %v1904 = vadd.f32 %v1776, %v1840
        %v1905 = vadd.f32 %v1777, %v1841
        %v1906 = vadd.f32 %v1778, %v1842
        %v1907 = vadd.f32 %v1779, %v1843
        %v1908 = vadd.f32 %v1780, %v1844
        %v1909 = vadd.f32 %v1781, %v1845
        %v1910 = vadd.f32 %v1782, %v1846
        %v1911 = vadd.f32 %v1783, %v1847
        %v1912 = vadd.f32 %v1784, %v1848
        %v1913 = vadd.f32 %v1785, %v1849
        %v1914 = vadd.f32 %v1786, %v1850
        %v1915 = vadd.f32 %v1787, %v1851
        %v1916 = vadd.f32 %v1788, %v1852
        %v1917 = vadd.f32 %v1789, %v1853
        %v1918 = vadd.f32 %v1790, %v1854
        %v1919 = vadd.f32 %v1791, %v1855
        %v1920 = vadd.f32 %v1792, %v1856
        %v1921 = vadd.f32 %v1793, %v1857
        %v1922 = vadd.f32 %v1794, %v1858
        %v1923 = vadd.f32 %v1795, %v1859
        %v1924 = vadd.f32 %v1796, %v1860
        %v1925 = vadd.f32 %v1797, %v1861
        %v1926 = vadd.f32 %v1798, %v1862
        %v1927 = vadd.f32 %v1799, %v1863
        %v1928 = vadd.f32 %v1800, %v1864
        %v1929 = vadd.f32 %v1801, %v1865
        %v1930 = vadd.f32 %v1802, %v1866
        %v1931 = vadd.f32 %v1803, %v1867
        %v1932 = vadd.f32 %v1804, %v1868
        %v1933 = vadd.f32 %v1805, %v1869
        %v1934 = vadd.f32 %v1806, %v1870
        %v1935 = vadd.f32 %v1807, %v1871
        %v1936 = vadd.f32 %v1808, %v1872
        %v1937 = vadd.f32 %v1809, %v1873
        %v1938 = vadd.f32 %v1810, %v1874
        %v1939 = vadd.f32 %v1811, %v1875
        %v1940 = vadd.f32 %v1812, %v1876
        %v1941 = vadd.f32 %v1813, %v1877
        %v1942 = vadd.f32 %v1814, %v1878
        %v1943 = vadd.f32 %v1815, %v1879
        %v1944 = vadd.f32 %v1816, %v1880
        %v1945 = vadd.f32 %v1817, %v1881
        %v1946 = vadd.f32 %v1818, %v1882
        %v1947 = vadd.f32 %v1819, %v1883
        %v1948 = vadd.f32 %v1820, %v1884
        %v1949 = vadd.f32 %v1821, %v1885
        %v1950 = vadd.f32 %v1822, %v1886
        %v1951 = vadd.f32 %v1823, %v1887
        %v1952 = vadd.f32 %v1824, %v1888
        %v1953 = vadd.f32 %v1825, %v1889
        %v1954 = vadd.f32 %v1826, %v1890
        %v1955 = vadd.f32 %v1827, %v1891
        %v1956 = vadd.f32 %v1828, %v1892
        %v1957 = vpack.c.bf16 %v1895, %v1893
        %v1958 = vpack.c.bf16 %v1896, %v1894
        %v1959 = vpack.c.bf16 %v1899, %v1897
        %v1960 = vpack.c.bf16 %v1900, %v1898
        %v1961 = vpack.c.bf16 %v1903, %v1901
        %v1962 = vpack.c.bf16 %v1904, %v1902
        %v1963 = vpack.c.bf16 %v1907, %v1905
        %v1964 = vpack.c.bf16 %v1908, %v1906
        %v1965 = vpack.c.bf16 %v1911, %v1909
        %v1966 = vpack.c.bf16 %v1912, %v1910
        %v1967 = vpack.c.bf16 %v1915, %v1913
        %v1968 = vpack.c.bf16 %v1916, %v1914
        %v1969 = vpack.c.bf16 %v1919, %v1917
        %v1970 = vpack.c.bf16 %v1920, %v1918
        %v1971 = vpack.c.bf16 %v1923, %v1921
        %v1972 = vpack.c.bf16 %v1924, %v1922
        %v1973 = vpack.c.bf16 %v1927, %v1925
        %v1974 = vpack.c.bf16 %v1928, %v1926
        %v1975 = vpack.c.bf16 %v1931, %v1929
        %v1976 = vpack.c.bf16 %v1932, %v1930
        %v1977 = vpack.c.bf16 %v1935, %v1933
        %v1978 = vpack.c.bf16 %v1936, %v1934
        %v1979 = vpack.c.bf16 %v1939, %v1937
        %v1980 = vpack.c.bf16 %v1940, %v1938
        %v1981 = vpack.c.bf16 %v1943, %v1941
        %v1982 = vpack.c.bf16 %v1944, %v1942
        %v1983 = vpack.c.bf16 %v1947, %v1945
        %v1984 = vpack.c.bf16 %v1948, %v1946
        %v1985 = vpack.c.bf16 %v1951, %v1949
        %v1986 = vpack.c.bf16 %v1952, %v1950
        %v1987 = vpack.c.bf16 %v1955, %v1953
        %v1988 = vpack.c.bf16 %v1956, %v1954
        %v1989 = vld [vmem:[%s7] sm:$0xf]
        %v1990 = vld [vmem:[%s7 + $0x4] sm:$0xf]
        %v1991 = vld [vmem:[%s7 + $0x8] sm:$0xf]
        %v1992 = vld [vmem:[%s7 + $0xc] sm:$0xf]
        %v1993 = vld [vmem:[%s7 + $0x10] sm:$0xf]
        %v1994 = vld [vmem:[%s7 + $0x14] sm:$0xf]
        %v1995 = vld [vmem:[%s7 + $0x18] sm:$0xf]
        %v1996 = vld [vmem:[%s7 + $0x1c] sm:$0xf]
        %v1997 = vld [vmem:[%s7 + $0x20] sm:$0xf]
        %v1998 = vld [vmem:[%s7 + $0x24] sm:$0xf]
        %v1999 = vld [vmem:[%s7 + $0x28] sm:$0xf]
        %v2000 = vld [vmem:[%s7 + $0x2c] sm:$0xf]
        %v2001 = vld [vmem:[%s7 + $0x30] sm:$0xf]
        %v2002 = vld [vmem:[%s7 + $0x34] sm:$0xf]
        %v2003 = vld [vmem:[%s7 + $0x38] sm:$0xf]
        %v2004 = vld [vmem:[%s7 + $0x3c] sm:$0xf]
        %v2005 = vld [vmem:[%s7 + $0x40] sm:$0xf]
        %v2006 = vld [vmem:[%s7 + $0x44] sm:$0xf]
        %v2007 = vld [vmem:[%s7 + $0x48] sm:$0xf]
        %v2008 = vld [vmem:[%s7 + $0x4c] sm:$0xf]
        %v2009 = vld [vmem:[%s7 + $0x50] sm:$0xf]
        %v2010 = vld [vmem:[%s7 + $0x54] sm:$0xf]
        %v2011 = vld [vmem:[%s7 + $0x58] sm:$0xf]
        %v2012 = vld [vmem:[%s7 + $0x5c] sm:$0xf]
        %v2013 = vld [vmem:[%s7 + $0x60] sm:$0xf]
        %v2014 = vld [vmem:[%s7 + $0x64] sm:$0xf]
        %v2015 = vld [vmem:[%s7 + $0x68] sm:$0xf]
        %v2016 = vld [vmem:[%s7 + $0x6c] sm:$0xf]
        %v2017 = vld [vmem:[%s7 + $0x70] sm:$0xf]
        %v2018 = vld [vmem:[%s7 + $0x74] sm:$0xf]
        %v2019 = vld [vmem:[%s7 + $0x78] sm:$0xf]
        %v2020 = vld [vmem:[%s7 + $0x7c] sm:$0xf]
        %v2053 = vunpack.c.l.b16 %v1989
        %v2054 = vunpack.c.l.b16 %v1990
        %v2055 = vunpack.c.l.b16 %v1991
        %v2056 = vunpack.c.l.b16 %v1992
        %v2057 = vunpack.c.l.b16 %v1993
        %v2058 = vunpack.c.l.b16 %v1994
        %v2059 = vunpack.c.l.b16 %v1995
        %v2060 = vunpack.c.l.b16 %v1996
        %v2061 = vunpack.c.l.b16 %v1997
        %v2062 = vunpack.c.l.b16 %v1998
        %v2063 = vunpack.c.l.b16 %v1999
        %v2064 = vunpack.c.l.b16 %v2000
        %v2065 = vunpack.c.l.b16 %v2001
        %v2066 = vunpack.c.l.b16 %v2002
        %v2067 = vunpack.c.l.b16 %v2003
        %v2068 = vunpack.c.l.b16 %v2004
        %v2069 = vunpack.c.l.b16 %v2005
        %v2070 = vunpack.c.l.b16 %v2006
        %v2071 = vunpack.c.l.b16 %v2007
        %v2072 = vunpack.c.l.b16 %v2008
        %v2073 = vunpack.c.l.b16 %v2009
        %v2074 = vunpack.c.l.b16 %v2010
        %v2075 = vunpack.c.l.b16 %v2011
        %v2076 = vunpack.c.l.b16 %v2012
        %v2077 = vunpack.c.l.b16 %v2013
        %v2078 = vunpack.c.l.b16 %v2014
        %v2079 = vunpack.c.l.b16 %v2015
        %v2080 = vunpack.c.l.b16 %v2016
        %v2081 = vunpack.c.l.b16 %v2017
        %v2082 = vunpack.c.l.b16 %v2018
        %v2083 = vunpack.c.l.b16 %v2019
        %v2084 = vunpack.c.l.b16 %v2020
        %v2085 = vpack.c.b16 %v2054, %v2053
        %v2086 = vpack.c.b16 %v2056, %v2055
        %v2087 = vpack.c.b16 %v2058, %v2057
        %v2088 = vpack.c.b16 %v2060, %v2059
        %v2089 = vpack.c.b16 %v2062, %v2061
        %v2090 = vpack.c.b16 %v2064, %v2063
        %v2091 = vpack.c.b16 %v2066, %v2065
        %v2092 = vpack.c.b16 %v2068, %v2067
        %v2093 = vpack.c.b16 %v2070, %v2069
        %v2094 = vpack.c.b16 %v2072, %v2071
        %v2095 = vpack.c.b16 %v2074, %v2073
        %v2096 = vpack.c.b16 %v2076, %v2075
        %v2097 = vpack.c.b16 %v2078, %v2077
        %v2098 = vpack.c.b16 %v2080, %v2079
        %v2099 = vpack.c.b16 %v2082, %v2081
        %v2100 = vpack.c.b16 %v2084, %v2083
        %2117 = vmatprep.subr.bf16.mxu0 0
        %2118 = vmatpush1.bf16.msra.mxu0 %v2085
        %2119 = vmatprep.subr.bf16.mxu0 0
        %2120 = vmatpush1.bf16.msra.mxu0 %v2086
        %2121 = vmatprep.subr.bf16.mxu0 0
        %2122 = vmatpush1.bf16.msra.mxu0 %v2087
        %2123 = vmatprep.subr.bf16.mxu0 0
        %2124 = vmatpush1.bf16.msra.mxu0 %v2088
        %2125 = vmatprep.subr.bf16.mxu0 0
        %2126 = vmatpush1.bf16.msra.mxu0 %v2089
        %2127 = vmatprep.subr.bf16.mxu0 0
        %2128 = vmatpush1.bf16.msra.mxu0 %v2090
        %2129 = vmatprep.subr.bf16.mxu0 0
        %2130 = vmatpush1.bf16.msra.mxu0 %v2091
        %2131 = vmatprep.subr.bf16.mxu0 0
        %2132 = vmatpush1.bf16.msra.mxu0 %v2092
        %2133 = vmatprep.subr.bf16.mxu0 0
        %2134 = vmatpush1.bf16.msra.mxu0 %v2093
        %2135 = vmatprep.subr.bf16.mxu0 0
        %2136 = vmatpush1.bf16.msra.mxu0 %v2094
        %2137 = vmatprep.subr.bf16.mxu0 0
        %2138 = vmatpush1.bf16.msra.mxu0 %v2095
        %2139 = vmatprep.subr.bf16.mxu0 0
        %2140 = vmatpush1.bf16.msra.mxu0 %v2096
        %2141 = vmatprep.subr.bf16.mxu0 0
        %2142 = vmatpush1.bf16.msra.mxu0 %v2097
        %2143 = vmatprep.subr.bf16.mxu0 0
        %2144 = vmatpush1.bf16.msra.mxu0 %v2098
        %2145 = vmatprep.subr.bf16.mxu0 0
        %2146 = vmatpush1.bf16.msra.mxu0 %v2099
        %2147 = vmatprep.subr.bf16.mxu0 0
        %2148 = vmatpush1.bf16.msra.mxu0 %v2100
        %2149 = vmatprep.mubr.bf16.mxu0 %v1958
        %2150 = vmatmul.mubr.bf16.gmra.mrb[0].mxu0 %v1957
        %v2151 = vpop.f32.mrb[0].mxu0
        %v2152 = vadd.f32 0.0, %v2151
        %v2153 = vpop.f32.mrb[0].mxu0
        %v2154 = vpop.f32.mrb[0].mxu0
        %v2155 = vadd.f32 0.0, %v2154
        %v2156 = vpop.f32.mrb[0].mxu0
        %2157 = vmatprep.mubr.bf16.mxu0 %v1960
        %2158 = vmatmul.mubr.bf16.gmra.mrb[0].mxu0 %v1959
        %v2159 = vpop.f32.mrb[0].mxu0
        %v2160 = vadd.f32 0.0, %v2159
        %v2161 = vpop.f32.mrb[0].mxu0
        %v2162 = vpop.f32.mrb[0].mxu0
        %v2163 = vadd.f32 0.0, %v2162
        %v2164 = vpop.f32.mrb[0].mxu0
        %2165 = vmatprep.mubr.bf16.mxu0 %v1962
        %2166 = vmatmul.mubr.bf16.gmra.mrb[0].mxu0 %v1961
        %v2167 = vpop.f32.mrb[0].mxu0
        %v2168 = vadd.f32 0.0, %v2167
        %v2169 = vpop.f32.mrb[0].mxu0
        %v2170 = vpop.f32.mrb[0].mxu0
        %v2171 = vadd.f32 0.0, %v2170
        %v2172 = vpop.f32.mrb[0].mxu0
        %2173 = vmatprep.mubr.bf16.mxu0 %v1964
        %2174 = vmatmul.mubr.bf16.gmra.mrb[0].mxu0 %v1963
        %v2175 = vpop.f32.mrb[0].mxu0
        %v2176 = vadd.f32 0.0, %v2175
        %v2177 = vpop.f32.mrb[0].mxu0
        %v2178 = vpop.f32.mrb[0].mxu0
        %v2179 = vadd.f32 0.0, %v2178
        %v2180 = vpop.f32.mrb[0].mxu0
        %2181 = vmatprep.mubr.bf16.mxu0 %v1966
        %2182 = vmatmul.mubr.bf16.gmra.mrb[0].mxu0 %v1965
        %v2183 = vpop.f32.mrb[0].mxu0
        %v2184 = vadd.f32 0.0, %v2183
        %v2185 = vpop.f32.mrb[0].mxu0
        %v2186 = vpop.f32.mrb[0].mxu0
        %v2187 = vadd.f32 0.0, %v2186
        %v2188 = vpop.f32.mrb[0].mxu0
        %2189 = vmatprep.mubr.bf16.mxu0 %v1968
        %2190 = vmatmul.mubr.bf16.gmra.mrb[0].mxu0 %v1967
        %v2191 = vpop.f32.mrb[0].mxu0
        %v2192 = vadd.f32 0.0, %v2191
        %v2193 = vpop.f32.mrb[0].mxu0
        %v2194 = vpop.f32.mrb[0].mxu0
        %v2195 = vadd.f32 0.0, %v2194
        %v2196 = vpop.f32.mrb[0].mxu0
        %2197 = vmatprep.mubr.bf16.mxu0 %v1970
        %2198 = vmatmul.mubr.bf16.gmra.mrb[0].mxu0 %v1969
        %v2199 = vpop.f32.mrb[0].mxu0
        %v2200 = vadd.f32 0.0, %v2199
        %v2201 = vpop.f32.mrb[0].mxu0
        %v2202 = vpop.f32.mrb[0].mxu0
        %v2203 = vadd.f32 0.0, %v2202
        %v2204 = vpop.f32.mrb[0].mxu0
        %2205 = vmatprep.mubr.bf16.mxu0 %v1972
        %2206 = vmatmul.mubr.bf16.gmra.mrb[0].mxu0 %v1971
        %v2207 = vpop.f32.mrb[0].mxu0
        %v2208 = vadd.f32 0.0, %v2207
        %v2209 = vpop.f32.mrb[0].mxu0
        %v2210 = vpop.f32.mrb[0].mxu0
        %v2211 = vadd.f32 0.0, %v2210
        %v2212 = vpop.f32.mrb[0].mxu0
        %2213 = vmatprep.mubr.bf16.mxu0 %v1974
        %2214 = vmatmul.mubr.bf16.gmra.mrb[0].mxu0 %v1973
        %v2215 = vpop.f32.mrb[0].mxu0
        %v2216 = vadd.f32 0.0, %v2215
        %v2217 = vpop.f32.mrb[0].mxu0
        %v2218 = vpop.f32.mrb[0].mxu0
        %v2219 = vadd.f32 0.0, %v2218
        %v2220 = vpop.f32.mrb[0].mxu0
        %2221 = vmatprep.mubr.bf16.mxu0 %v1976
        %2222 = vmatmul.mubr.bf16.gmra.mrb[0].mxu0 %v1975
        %v2223 = vpop.f32.mrb[0].mxu0
        %v2224 = vadd.f32 0.0, %v2223
        %v2225 = vpop.f32.mrb[0].mxu0
        %v2226 = vpop.f32.mrb[0].mxu0
        %v2227 = vadd.f32 0.0, %v2226
        %v2228 = vpop.f32.mrb[0].mxu0
        %2229 = vmatprep.mubr.bf16.mxu0 %v1978
        %2230 = vmatmul.mubr.bf16.gmra.mrb[0].mxu0 %v1977
        %v2231 = vpop.f32.mrb[0].mxu0
        %v2232 = vadd.f32 0.0, %v2231
        %v2233 = vpop.f32.mrb[0].mxu0
        %v2234 = vpop.f32.mrb[0].mxu0
        %v2235 = vadd.f32 0.0, %v2234
        %v2236 = vpop.f32.mrb[0].mxu0
        %2237 = vmatprep.mubr.bf16.mxu0 %v1980
        %2238 = vmatmul.mubr.bf16.gmra.mrb[0].mxu0 %v1979
        %v2239 = vpop.f32.mrb[0].mxu0
        %v2240 = vadd.f32 0.0, %v2239
        %v2241 = vpop.f32.mrb[0].mxu0
        %v2242 = vpop.f32.mrb[0].mxu0
        %v2243 = vadd.f32 0.0, %v2242
        %v2244 = vpop.f32.mrb[0].mxu0
        %2245 = vmatprep.mubr.bf16.mxu0 %v1982
        %2246 = vmatmul.mubr.bf16.gmra.mrb[0].mxu0 %v1981
        %v2247 = vpop.f32.mrb[0].mxu0
        %v2248 = vadd.f32 0.0, %v2247
        %v2249 = vpop.f32.mrb[0].mxu0
        %v2250 = vpop.f32.mrb[0].mxu0
        %v2251 = vadd.f32 0.0, %v2250
        %v2252 = vpop.f32.mrb[0].mxu0
        %2253 = vmatprep.mubr.bf16.mxu0 %v1984
        %2254 = vmatmul.mubr.bf16.gmra.mrb[0].mxu0 %v1983
        %v2255 = vpop.f32.mrb[0].mxu0
        %v2256 = vadd.f32 0.0, %v2255
        %v2257 = vpop.f32.mrb[0].mxu0
        %v2258 = vpop.f32.mrb[0].mxu0
        %v2259 = vadd.f32 0.0, %v2258
        %v2260 = vpop.f32.mrb[0].mxu0
        %2261 = vmatprep.mubr.bf16.mxu0 %v1986
        %2262 = vmatmul.mubr.bf16.gmra.mrb[0].mxu0 %v1985
        %v2263 = vpop.f32.mrb[0].mxu0
        %v2264 = vadd.f32 0.0, %v2263
        %v2265 = vpop.f32.mrb[0].mxu0
        %v2266 = vpop.f32.mrb[0].mxu0
        %v2267 = vadd.f32 0.0, %v2266
        %v2268 = vpop.f32.mrb[0].mxu0
        %2269 = vmatprep.mubr.bf16.mxu0 %v1988
        %2270 = vmatmul.mubr.bf16.gmra.mrb[0].mxu0 %v1987
        %v2271 = vpop.f32.mrb[0].mxu0
        %v2272 = vadd.f32 0.0, %v2271
        %v2273 = vpop.f32.mrb[0].mxu0
        %v2274 = vpop.f32.mrb[0].mxu0
        %v2275 = vadd.f32 0.0, %v2274
        %v2276 = vpop.f32.mrb[0].mxu0
        %2277 = vdwg.mxu0
        %vm2278 = vcmask 80896
        %2279 = vst.msk [vmem:[%s322] sm:$0xff] %vm2278, %v2152
        %2280 = vst.msk [vmem:[%s322 + $0x8] sm:$0xff] %vm2278, %v2155
        %2281 = vst.msk [vmem:[%s322 + $0x10] sm:$0xff] %vm2278, %v2160
        %2282 = vst.msk [vmem:[%s322 + $0x18] sm:$0xff] %vm2278, %v2163
        %2283 = vst.msk [vmem:[%s322 + $0x20] sm:$0xff] %vm2278, %v2168
        %2284 = vst.msk [vmem:[%s322 + $0x28] sm:$0xff] %vm2278, %v2171
        %2285 = vst.msk [vmem:[%s322 + $0x30] sm:$0xff] %vm2278, %v2176
        %2286 = vst.msk [vmem:[%s322 + $0x38] sm:$0xff] %vm2278, %v2179
        %2287 = vst.msk [vmem:[%s322 + $0x40] sm:$0xff] %vm2278, %v2184
        %2288 = vst.msk [vmem:[%s322 + $0x48] sm:$0xff] %vm2278, %v2187
        %2289 = vst.msk [vmem:[%s322 + $0x50] sm:$0xff] %vm2278, %v2192
        %2290 = vst.msk [vmem:[%s322 + $0x58] sm:$0xff] %vm2278, %v2195
        %2291 = vst.msk [vmem:[%s322 + $0x60] sm:$0xff] %vm2278, %v2200
        %2292 = vst.msk [vmem:[%s322 + $0x68] sm:$0xff] %vm2278, %v2203
        %2293 = vst.msk [vmem:[%s322 + $0x70] sm:$0xff] %vm2278, %v2208
        %2294 = vst.msk [vmem:[%s322 + $0x78] sm:$0xff] %vm2278, %v2211
        %2295 = vst.msk [vmem:[%s322 + $0x80] sm:$0xff] %vm2278, %v2216
        %2296 = vst.msk [vmem:[%s322 + $0x88] sm:$0xff] %vm2278, %v2219
        %2297 = vst.msk [vmem:[%s322 + $0x90] sm:$0xff] %vm2278, %v2224
        %2298 = vst.msk [vmem:[%s322 + $0x98] sm:$0xff] %vm2278, %v2227
        %2299 = vst.msk [vmem:[%s322 + $0xa0] sm:$0xff] %vm2278, %v2232
        %2300 = vst.msk [vmem:[%s322 + $0xa8] sm:$0xff] %vm2278, %v2235
        %2301 = vst.msk [vmem:[%s322 + $0xb0] sm:$0xff] %vm2278, %v2240
        %2302 = vst.msk [vmem:[%s322 + $0xb8] sm:$0xff] %vm2278, %v2243
        %2303 = vst.msk [vmem:[%s322 + $0xc0] sm:$0xff] %vm2278, %v2248
        %2304 = vst.msk [vmem:[%s322 + $0xc8] sm:$0xff] %vm2278, %v2251
        %2305 = vst.msk [vmem:[%s322 + $0xd0] sm:$0xff] %vm2278, %v2256
        %2306 = vst.msk [vmem:[%s322 + $0xd8] sm:$0xff] %vm2278, %v2259
        %2307 = vst.msk [vmem:[%s322 + $0xe0] sm:$0xff] %vm2278, %v2264
        %2308 = vst.msk [vmem:[%s322 + $0xe8] sm:$0xff] %vm2278, %v2267
        %2309 = vst.msk [vmem:[%s322 + $0xf0] sm:$0xff] %vm2278, %v2272
        %2310 = vst.msk [vmem:[%s322 + $0xf8] sm:$0xff] %vm2278, %v2275
        %s2311 = smul.u32 32, %s20
        %p2312 = scmp.lt.s32.totalorder %s2311, 63
        %s2313 = scalar_select %p2312, %s2311, 63
        %s2314 = smul.addr %s2313, 8
        %s2315 = scalar_lea.vmem %s8, %s2314
        // Predicated region
        $region57: #{tpu_custom_call.1} parent=51 // pred_check
          %p2316 = pneg %p211
        $region58: #{tpu_custom_call.1} parent=51 // pred_check_branch
          %2318 = sbr.rel (%p2316) target = $region60
        $region59: #{tpu_custom_call.1} parent=51 // pred_region
          %s2319 = smul.u32 32, %s20
        $region60: #{tpu_custom_call.1} parent=51 // pred_fallthru
          _
      $region52: #{tpu_custom_call.1} parent=5 // pred_fallthru
        _
      %p2320 = scmp.le.s32.totalorder 2, %s15
      // Predicated region
      $region61: #{tpu_custom_call.1} parent=5 // pred_check
        %p2321 = pneg %p2320
      $region62: #{tpu_custom_call.1} parent=5 // pred_check_branch
        %2323 = sbr.rel (%p2321) target = $region64
      $region63: #{tpu_custom_call.1} parent=5 // pred_region
        %s2324 = ssub.s32 %s15, 2
        // Predicated region
        $region65: #{tpu_custom_call.1} parent=63 // pred_check
          %p2325 = pneg %p217
        $region66: #{tpu_custom_call.1} parent=63 // pred_check_branch
          %2327 = sbr.rel (%p2325) target = $region68
        $region67: #{tpu_custom_call.1} parent=63 // pred_region
          %s2328 = smul.u32 32, %s21
          %p2329 = scmp.lt.s32.totalorder %s2328, 63
          %s2330 = scalar_select %p2329, %s2328, 63
          %s2331 = smul.addr %s2330, 8
          %s2332 = scalar_lea.vmem %s8, %s2331
        $region68: #{tpu_custom_call.1} parent=63 // pred_fallthru
          _
      $region64: #{tpu_custom_call.1} parent=5 // pred_fallthru
        _
    $region6: #{tpu_custom_call.1} parent=1 // loop_footer
      %s19 = sadd.s32 1, %s15
    $region7: #{tpu_custom_call.1} parent=1 // loop_footer_branch
      %14 = sbr.rel target = $region3
    $region8: #{tpu_custom_call.1} parent=1 // loop_exit
      _
    %2333 = vsyncpa [#allocation3], 1
    %s2334 = scalar_lea.sflag [#allocation3], 1
    %2335 = vsyncpa %s2334, 1

</llo_original>
